<compile_context>
chip_gen: v6e
topology: v6e:2x2x1
jax: 0.10.0
libtpu: 0.0.40
codegen_flags: <defaults>
</compile_context>

<pallas_src>
import functools

import jax
import jax.numpy as jnp
from jax.experimental import pallas as pl
from jax.experimental.pallas import tpu as pltpu

BN_EPS = 1e-5


def _row_toeplitz(wt_tapmajor, K, W, cin, cout):
    """Pack tap-major conv weights (K*K, cin, cout) into K block-Toeplitz
    matrices (W*cin, W*cout) so a 'same' KxK conv becomes
        out_row[h] = sum_ki  x_row_zeropadded[h + ki] @ T[ki]
    with rows laid out lane-dense as lane = w*cin + ci (input) / w*cout + co
    (output).  The w-axis zero padding is folded into the Toeplitz truncation."""
    f32 = jnp.float32
    wt = wt_tapmajor.reshape(K, K, cin, cout).astype(f32)
    pad = (K - 1) // 2
    mats = []
    for ki in range(K):
        t = jnp.zeros((W * cin, W * cout), f32)
        for kj in range(K):
            # sel[wi, wo] = 1  iff  wi - wo == kj - pad
            sel = jnp.eye(W, W, k=pad - kj, dtype=f32)
            t = t + jnp.kron(sel, wt[ki, kj])
        mats.append(t)
    return jnp.stack(mats, axis=0)  # (K, W*cin, W*cout)


def pack_fem_params(params, W):
    """One-time (init-time) weight repack into the kernel's operands.
    Hoisted out of the jitted forward path per perf review — the Toeplitz /
    eye / kron construction is never re-emitted per call."""
    f32 = jnp.float32
    Cin, Cout = params["w3"].shape[1], params["w3"].shape[2]
    WCi, WCo = W * Cin, W * Cout

    # Fused conv3+conv5 weight slab: 5 tap-blocks of (WCi) rows, 2*WCo columns
    # (cols 0..WCo-1 = conv3 branch, cols WCo.. = conv5 branch).
    t3 = _row_toeplitz(params["w3"], 3, W, Cin, Cout)          # (3, WCi, WCo)
    t5 = _row_toeplitz(params["w5"], 5, W, Cin, Cout)          # (5, WCi, WCo)
    t3p = jnp.pad(t3, ((1, 1), (0, 0), (0, 0)))                # align to 5 taps
    w_conv = jnp.concatenate([t3p, t5], axis=2).reshape(5 * WCi, 2 * WCo)

    tile = lambda v: jnp.tile(v.reshape(1, -1).astype(f32), (1, W))  # (1, WCo)
    b_conv = jnp.concatenate([tile(params["b3"]), tile(params["b5"])], axis=1)
    bn_g2 = jnp.concatenate([tile(params["bn_g"])] * 2, axis=1)       # (1,2*WCo)
    bn_b2 = jnp.concatenate([tile(params["bn_b"])] * 2, axis=1)

    # Channel-group-sum matrix for both branches in one MXU push:
    # csum[i,j] = 1 iff same branch (i//WCo == j//WCo) and same channel.
    lane = jnp.arange(2 * WCo)
    csum = ((lane[:, None] // WCo == lane[None, :] // WCo)
            & (lane[:, None] % Cout == lane[None, :] % Cout)).astype(f32)

    # Lane-shift matrices (shift by +-Cout lanes == +-1 in w) for the max pool.
    m_next = jnp.eye(WCo, WCo, k=-Cout, dtype=f32)   # out[:, j] = in[:, j+Cout]
    m_prev = jnp.eye(WCo, WCo, k=Cout, dtype=f32)    # out[:, j] = in[:, j-Cout]
    w_pool_max = jnp.concatenate([m_next, m_prev], axis=1)       # (WCo, 2*WCo)

    # conv_merge: split the 2*Cout-input-channel conv into max/avg halves, and
    # fold the avg pool's w-direction (sum of 3 shifts, /9) into the avg half.
    wm = params["wm"]                                            # (9,2*Cout,Cout)
    tmx = _row_toeplitz(wm[:, :Cout, :], 3, W, Cout, Cout)       # (3, WCo, WCo)
    tav = _row_toeplitz(wm[:, Cout:, :], 3, W, Cout, Cout)
    s_avg = (jnp.eye(WCo, dtype=f32) + m_next + m_prev) / 9.0
    tav_f = jnp.einsum("ab,kbc->kac", s_avg, tav)                # fold w-avg
    w_merge = jnp.concatenate([tmx, tav_f], axis=1).reshape(6 * WCo, WCo)
    bm = tile(params["bm"])

    return dict(w_conv=w_conv, b_conv=b_conv, bn_g2=bn_g2, bn_b2=bn_b2,
                csum=csum, w_pool_max=w_pool_max, w_merge=w_merge, bm=bm)


def _fem_kernel(x_ref, wconv_ref, bconv_ref, g_ref, beta_ref, csum_ref,
                wpool_ref, wmerge_ref, bm_ref, out_ref, *, B, H, W, Cin, Cout):
    f32 = jnp.float32
    WCi, WCo, BH = W * Cin, W * Cout, B * H

    x = x_ref[...]                                           # (B, H, W*Cin)

    # ---- fused conv3x3 + conv5x5: one stacked-contraction matmul -----------
    zr2 = jnp.zeros((B, 2, WCi), f32)
    xp = jnp.concatenate([zr2, x, zr2], axis=1)              # (B, H+4, WCi)
    lhs = jnp.concatenate([xp[:, ki:ki + H, :] for ki in range(5)],
                          axis=2).reshape(BH, 5 * WCi)       # (BH, 5*WCi)
    z = jnp.dot(lhs, wconv_ref[...], preferred_element_type=f32)
    z = z + bconv_ref[...]                                   # (BH, 2*WCo)

    # ---- training-mode BatchNorm2d + SiLU on both branches at once ---------
    inv_n = 1.0 / float(B * H * W)
    s1 = jnp.sum(z, axis=0, keepdims=True)                   # (1, 2*WCo)
    s2 = jnp.sum(z * z, axis=0, keepdims=True)
    sums = jnp.dot(jnp.concatenate([s1, s2], axis=0), csum_ref[...],
                   preferred_element_type=f32)               # (2, 2*WCo)
    mean = sums[0:1] * inv_n
    var = sums[1:2] * inv_n - mean * mean
    scale = g_ref[...] * jax.lax.rsqrt(var + BN_EPS)
    shift = beta_ref[...] - mean * scale
    zn = z * scale + shift
    # SiLU; exact divide kept on purpose (its error feeds the merge/softmax
    # chain — exact form preserves headroom under the 1e-4 reference check).
    r12 = zn * (1.0 / (1.0 + jnp.exp(-zn)))
    r1 = r12[:, :WCo]                                        # (BH, WCo)
    r2 = r12[:, WCo:]

    rm = (r1 + r2).reshape(B, H, WCo)

    # ---- 3x3 / stride-1 / pad-1 pooling, separable --------------------------
    # H direction: one zero-padded slab per branch.  rm >= 2*min(SiLU) > -1, so
    # max-pooling rm+1 with zero padding is exactly max-pooling rm with -inf pad.
    zrow = jnp.zeros((B, 1, WCo), f32)
    rm_p = jnp.concatenate([zrow, rm, zrow], axis=1)          # avg branch (0 pad)
    rm1_p = jnp.concatenate([zrow, rm + 1.0, zrow], axis=1)   # max branch
    hsum = rm_p[:, 0:H] + rm_p[:, 1:H + 1] + rm_p[:, 2:H + 2]
    hmax1 = jnp.maximum(jnp.maximum(rm1_p[:, 0:H], rm1_p[:, 1:H + 1]),
                        rm1_p[:, 2:H + 2])
    # W direction (max branch): lane shifts via shifted-identity matmul on the
    # otherwise idle MXU (zero fill acts as -inf since hmax1 > 0).  The avg
    # branch's W-sum and /9 are already folded into w_merge, so Rn_avg is never
    # materialized — hsum feeds the merge conv directly.
    sh = jnp.dot(hmax1.reshape(BH, WCo), wpool_ref[...],
                 preferred_element_type=f32)                  # (BH, 2*WCo)
    mx1 = jnp.maximum(hmax1.reshape(BH, WCo),
                      jnp.maximum(sh[:, :WCo], sh[:, WCo:]))
    mx = (mx1 - 1.0).reshape(B, H, WCo)

    # ---- conv_merge: one stacked matmul over [max | h-summed-avg] lanes -----
    rn = jnp.concatenate([mx, hsum], axis=2)                  # (B, H, 2*WCo)
    zrow2 = jnp.zeros((B, 1, 2 * WCo), f32)
    rn_p = jnp.concatenate([zrow2, rn, zrow2], axis=1)        # (B, H+2, 2*WCo)
    mlhs = jnp.concatenate([rn_p[:, ki:ki + H, :] for ki in range(3)],
                           axis=2).reshape(BH, 6 * WCo)       # (BH, 6*WCo)
    rp = (jnp.dot(mlhs, wmerge_ref[...], preferred_element_type=f32)
          + bm_ref[...]).reshape(B, H, WCo)

    # ---- softmax over the NCHW-flattened Rp; only flat indices 0 and 1 used --
    m = jnp.max(jnp.max(rp, axis=2, keepdims=True), axis=1, keepdims=True)
    e = jnp.exp(rp - m)
    s = jnp.sum(jnp.sum(e, axis=2, keepdims=True), axis=1, keepdims=True)
    inv_s = pl.reciprocal(s, approx=True)        # EUP; ~2^-12 rel << 1e-4 budget
    g0 = e[:, 0:1, 0:1] * inv_s                  # NCHW flat 0 = (c0,h0,w0) -> lane 0
    g1 = e[:, 0:1, Cout:Cout + 1] * inv_s        # NCHW flat 1 = (c0,h0,w1) -> lane Cout

    out_ref[...] = r1.reshape(B, H, WCo) * g0 + r2.reshape(B, H, WCo) * g1


@jax.jit
def fem_forward(x_nchw, packed):
    """FEM forward; input NCHW (like PyTorch), output NCHW.  `packed` comes from
    pack_fem_params (computed once at init)."""
    f32 = jnp.float32
    B, Cin, H, W = x_nchw.shape
    WCo = packed["bm"].shape[-1]
    Cout = WCo // W

    # NCHW -> lane-dense rows (B, H, W*Cin);  lane = w*Cin + ci
    x_rows = jnp.transpose(x_nchw.astype(f32), (0, 2, 3, 1)).reshape(B, H, W * Cin)

    kernel = functools.partial(_fem_kernel, B=B, H=H, W=W, Cin=Cin, Cout=Cout)
    out = pl.pallas_call(
        kernel,
        out_shape=jax.ShapeDtypeStruct((B, H, WCo), f32),
        in_specs=[pl.BlockSpec(memory_space=pltpu.MemorySpace.VMEM)] * 9,
        out_specs=pl.BlockSpec(memory_space=pltpu.MemorySpace.VMEM),
        # 32 MiB is fine on v5e/v6e/v7x at these shapes; re-derive against the
        # 64 MiB physical VMEM of v7x when the TODO'd large-shape tiling lands.
        compiler_params=pltpu.CompilerParams(vmem_limit_bytes=32 * 1024 * 1024),
    )(x_rows, packed["w_conv"], packed["b_conv"], packed["bn_g2"],
      packed["bn_b2"], packed["csum"], packed["w_pool_max"],
      packed["w_merge"], packed["bm"])

    # lane-dense (B, H, W*Cout) -> NCHW
    return jnp.transpose(out.reshape(B, H, W, Cout), (0, 3, 1, 2))


# ---------------- pure-JAX reference (same math, XLA-computed) ----------------
def fem_ref(x_nchw, params):
    x = jnp.transpose(x_nchw, (0, 2, 3, 1)).astype(jnp.float32)
    B, H, W, Cin = x.shape
    Cout = params["b3"].shape[-1]
    hi = jax.lax.Precision.HIGHEST

    def conv(xin, wt, b, K, pad):
        xp = jnp.pad(xin, ((0, 0), (pad, pad), (pad, pad), (0, 0)))
        acc = jnp.zeros((B, H, W, wt.shape[-1]), jnp.float32)
        t = 0
        for ki in range(K):
            for kj in range(K):
                patch = xp[:, ki:ki + H, kj:kj + W, :]
                acc = acc + jnp.einsum("bhwc,cd->bhwd", patch, wt[t], precision=hi)
                t += 1
        return acc + b.reshape(1, 1, 1, -1)

    def bn_silu(z):
        mean = jnp.mean(z, axis=(0, 1, 2), keepdims=True)
        var = jnp.mean((z - mean) ** 2, axis=(0, 1, 2), keepdims=True)
        zn = (z - mean) / jnp.sqrt(var + BN_EPS)
        zn = zn * params["bn_g"].reshape(1, 1, 1, -1) + params["bn_b"].reshape(1, 1, 1, -1)
        return zn * jax.nn.sigmoid(zn)

    r1 = bn_silu(conv(x, params["w3"], params["b3"], 3, 1))
    r2 = bn_silu(conv(x, params["w5"], params["b5"], 5, 2))
    rm = r1 + r2
    pm = jnp.pad(rm, ((0, 0), (1, 1), (1, 1), (0, 0)), constant_values=-jnp.inf)
    pa = jnp.pad(rm, ((0, 0), (1, 1), (1, 1), (0, 0)))
    mx = functools.reduce(jnp.maximum,
                          [pm[:, di:di + H, dj:dj + W, :] for di in range(3) for dj in range(3)])
    av = sum(pa[:, di:di + H, dj:dj + W, :] for di in range(3) for dj in range(3)) / 9.0
    rn = jnp.concatenate([mx, av], axis=-1)
    rp = conv(rn, params["wm"], params["bm"], 3, 1)
    rp_flat = jnp.transpose(rp, (0, 3, 1, 2)).reshape(B, -1)       # NCHW flatten
    gamma = jax.nn.softmax(rp_flat, axis=1)
    g0 = gamma[:, 0].reshape(B, 1, 1, 1)
    g1 = gamma[:, 1].reshape(B, 1, 1, 1)
    out = r1 * g0 + r2 * g1
    return jnp.transpose(out, (0, 3, 1, 2))


if __name__ == "__main__":
    # FEM(in_channels=8, out_channels=8, feature_map_size=16, fc_out_dim unused)
    B, Cin, Cout, H, W = 2, 8, 8, 16, 16
    key = jax.random.PRNGKey(0)
    ks = jax.random.split(key, 8)
    x = jax.random.normal(ks[0], (B, Cin, H, W), jnp.float32)
    params = dict(
        w3=0.1 * jax.random.normal(ks[1], (9, Cin, Cout), jnp.float32),      # 3x3 conv, tap-major
        b3=0.05 * jax.random.normal(ks[2], (1, Cout), jnp.float32),
        w5=0.1 * jax.random.normal(ks[3], (25, Cin, Cout), jnp.float32),     # 5x5 conv, tap-major
        b5=0.05 * jax.random.normal(ks[4], (1, Cout), jnp.float32),
        bn_g=jnp.ones((1, Cout), jnp.float32),                               # BatchNorm2d default init
        bn_b=jnp.zeros((1, Cout), jnp.float32),
        wm=0.1 * jax.random.normal(ks[5], (9, 2 * Cout, Cout), jnp.float32),  # merge conv, tap-major
        bm=0.05 * jax.random.normal(ks[6], (1, Cout), jnp.float32),
    )

    packed = jax.tree_util.tree_map(jax.block_until_ready,
                                    pack_fem_params(params, W))  # once, at init

    out = jax.block_until_ready(fem_forward(x, packed))
    assert out.shape == (B, Cout, H, W), out.shape
    assert bool(jnp.all(jnp.isfinite(out)))

    ref = fem_ref(x, params)
    max_err = float(jnp.max(jnp.abs(out - ref)))
    assert max_err < 1e-4, f"mismatch vs reference: max abs err = {max_err}"

    print("KERNEL_OK")
</pallas_src>

<mosaic_0001>
module attributes {stable_mosaic.version = 11 : i64} {
  func.func @_fem_kernel(%arg0: memref<2x16x128xf32, #tpu.memory_space<vmem>>, %arg1: memref<640x256xf32, #tpu.memory_space<vmem>>, %arg2: memref<1x256xf32, #tpu.memory_space<vmem>>, %arg3: memref<1x256xf32, #tpu.memory_space<vmem>>, %arg4: memref<1x256xf32, #tpu.memory_space<vmem>>, %arg5: memref<256x256xf32, #tpu.memory_space<vmem>>, %arg6: memref<128x256xf32, #tpu.memory_space<vmem>>, %arg7: memref<768x128xf32, #tpu.memory_space<vmem>>, %arg8: memref<1x128xf32, #tpu.memory_space<vmem>>, %arg9: memref<2x16x128xf32, #tpu.memory_space<vmem>>) attributes {dimension_semantics = [], scalar_prefetch = 0 : i64, scratch_operands = 0 : i64, tpu.core_type = #tpu.core_type<tc>} {
    %c0 = arith.constant 0 : index
    %c0_0 = arith.constant 0 : index
    %c0_1 = arith.constant 0 : index
    %0 = vector.load %arg0[%c0, %c0_0, %c0_1] : memref<2x16x128xf32, #tpu.memory_space<vmem>>, vector<2x16x128xf32>
    %cst = arith.constant 0.000000e+00 : f32
    %1 = vector.broadcast %cst : f32 to vector<2x2x128xf32>
    %2 = tpu.concatenate %1, %0, %1 in 1 : vector<2x2x128xf32>, vector<2x16x128xf32>, vector<2x2x128xf32> -> vector<2x20x128xf32>
    %3 = vector.extract_strided_slice %2 {offsets = [0, 0, 0], sizes = [2, 16, 128], strides = [1, 1, 1]} : vector<2x20x128xf32> to vector<2x16x128xf32>
    %4 = vector.extract_strided_slice %2 {offsets = [0, 1, 0], sizes = [2, 16, 128], strides = [1, 1, 1]} : vector<2x20x128xf32> to vector<2x16x128xf32>
    %5 = vector.extract_strided_slice %2 {offsets = [0, 2, 0], sizes = [2, 16, 128], strides = [1, 1, 1]} : vector<2x20x128xf32> to vector<2x16x128xf32>
    %6 = vector.extract_strided_slice %2 {offsets = [0, 3, 0], sizes = [2, 16, 128], strides = [1, 1, 1]} : vector<2x20x128xf32> to vector<2x16x128xf32>
    %7 = vector.extract_strided_slice %2 {offsets = [0, 4, 0], sizes = [2, 16, 128], strides = [1, 1, 1]} : vector<2x20x128xf32> to vector<2x16x128xf32>
    %8 = tpu.concatenate %3, %4, %5, %6, %7 in 2 : vector<2x16x128xf32>, vector<2x16x128xf32>, vector<2x16x128xf32>, vector<2x16x128xf32>, vector<2x16x128xf32> -> vector<2x16x640xf32>
    %9 = vector.shape_cast %8 : vector<2x16x640xf32> to vector<32x640xf32>
    %c0_2 = arith.constant 0 : index
    %c0_3 = arith.constant 0 : index
    %10 = vector.load %arg1[%c0_2, %c0_3] : memref<640x256xf32, #tpu.memory_space<vmem>>, vector<640x256xf32>
    %cst_4 = arith.constant dense<0.000000e+00> : vector<32x256xf32>
    %11 = tpu.matmul %9, %10, %cst_4 {dimension_numbers = #tpu.dot_dimension_numbers<[1], [0], [0], [1], [0, 0, 1, 1], [], []>} : vector<32x640xf32>, vector<640x256xf32>, vector<32x256xf32> -> vector<32x256xf32>
    %c0_5 = arith.constant 0 : index
    %c0_6 = arith.constant 0 : index
    %12 = vector.load %arg2[%c0_5, %c0_6] : memref<1x256xf32, #tpu.memory_space<vmem>>, vector<1x256xf32>
    %13 = vector.broadcast %12 : vector<1x256xf32> to vector<32x256xf32>
    %14 = arith.addf %11, %13 : vector<32x256xf32>
    %cst_7 = arith.constant dense<0.000000e+00> : vector<256xf32>
    %15 = vector.multi_reduction <add>, %14, %cst_7 [0] : vector<32x256xf32> to vector<256xf32>
    %16 = vector.shape_cast %15 : vector<256xf32> to vector<1x256xf32>
    %17 = arith.mulf %14, %14 : vector<32x256xf32>
    %cst_8 = arith.constant dense<0.000000e+00> : vector<256xf32>
    %18 = vector.multi_reduction <add>, %17, %cst_8 [0] : vector<32x256xf32> to vector<256xf32>
    %19 = vector.shape_cast %18 : vector<256xf32> to vector<1x256xf32>
    %20 = tpu.concatenate %16, %19 in 0 : vector<1x256xf32>, vector<1x256xf32> -> vector<2x256xf32>
    %c0_9 = arith.constant 0 : index
    %c0_10 = arith.constant 0 : index
    %21 = vector.load %arg5[%c0_9, %c0_10] : memref<256x256xf32, #tpu.memory_space<vmem>>, vector<256x256xf32>
    %cst_11 = arith.constant dense<0.000000e+00> : vector<2x256xf32>
    %22 = tpu.matmul %20, %21, %cst_11 {dimension_numbers = #tpu.dot_dimension_numbers<[1], [0], [0], [1], [0, 0, 1, 1], [], []>} : vector<2x256xf32>, vector<256x256xf32>, vector<2x256xf32> -> vector<2x256xf32>
    %23 = vector.extract_strided_slice %22 {offsets = [0, 0], sizes = [1, 256], strides = [1, 1]} : vector<2x256xf32> to vector<1x256xf32>
    %cst_12 = arith.constant 0.001953125 : f32
    %24 = vector.broadcast %cst_12 : f32 to vector<1x256xf32>
    %25 = arith.mulf %23, %24 : vector<1x256xf32>
    %26 = vector.extract_strided_slice %22 {offsets = [1, 0], sizes = [1, 256], strides = [1, 1]} : vector<2x256xf32> to vector<1x256xf32>
    %cst_13 = arith.constant 0.001953125 : f32
    %27 = vector.broadcast %cst_13 : f32 to vector<1x256xf32>
    %28 = arith.mulf %26, %27 : vector<1x256xf32>
    %29 = arith.mulf %25, %25 : vector<1x256xf32>
    %30 = arith.subf %28, %29 : vector<1x256xf32>
    %c0_14 = arith.constant 0 : index
    %c0_15 = arith.constant 0 : index
    %31 = vector.load %arg3[%c0_14, %c0_15] : memref<1x256xf32, #tpu.memory_space<vmem>>, vector<1x256xf32>
    %cst_16 = arith.constant 9.99999974E-6 : f32
    %32 = vector.broadcast %cst_16 : f32 to vector<1x256xf32>
    %33 = arith.addf %30, %32 : vector<1x256xf32>
    %34 = math.rsqrt %33 : vector<1x256xf32>
    %35 = arith.mulf %31, %34 : vector<1x256xf32>
    %c0_17 = arith.constant 0 : index
    %c0_18 = arith.constant 0 : index
    %36 = vector.load %arg4[%c0_17, %c0_18] : memref<1x256xf32, #tpu.memory_space<vmem>>, vector<1x256xf32>
    %37 = arith.mulf %25, %35 : vector<1x256xf32>
    %38 = arith.subf %36, %37 : vector<1x256xf32>
    %39 = vector.broadcast %35 : vector<1x256xf32> to vector<32x256xf32>
    %40 = arith.mulf %14, %39 : vector<32x256xf32>
    %41 = vector.broadcast %38 : vector<1x256xf32> to vector<32x256xf32>
    %42 = arith.addf %40, %41 : vector<32x256xf32>
    %cst_19 = arith.constant 0.000000e+00 : f32
    %43 = vector.broadcast %cst_19 : f32 to vector<32x256xf32>
    %44 = arith.subf %43, %42 : vector<32x256xf32>
    %45 = math.exp %44 : vector<32x256xf32>
    %cst_20 = arith.constant 1.000000e+00 : f32
    %46 = vector.broadcast %cst_20 : f32 to vector<32x256xf32>
    %47 = arith.addf %46, %45 : vector<32x256xf32>
    %cst_21 = arith.constant 1.000000e+00 : f32
    %48 = vector.broadcast %cst_21 : f32 to vector<32x256xf32>
    %49 = arith.divf %48, %47 : vector<32x256xf32>
    %50 = arith.mulf %42, %49 : vector<32x256xf32>
    %51 = vector.extract_strided_slice %50 {offsets = [0, 0], sizes = [32, 128], strides = [1, 1]} : vector<32x256xf32> to vector<32x128xf32>
    %52 = vector.extract_strided_slice %50 {offsets = [0, 128], sizes = [32, 128], strides = [1, 1]} : vector<32x256xf32> to vector<32x128xf32>
    %53 = arith.addf %51, %52 : vector<32x128xf32>
    %54 = vector.shape_cast %53 : vector<32x128xf32> to vector<2x16x128xf32>
    %cst_22 = arith.constant 0.000000e+00 : f32
    %55 = vector.broadcast %cst_22 : f32 to vector<2x1x128xf32>
    %56 = tpu.concatenate %55, %54, %55 in 1 : vector<2x1x128xf32>, vector<2x16x128xf32>, vector<2x1x128xf32> -> vector<2x18x128xf32>
    %cst_23 = arith.constant 1.000000e+00 : f32
    %57 = vector.broadcast %cst_23 : f32 to vector<2x16x128xf32>
    %58 = arith.addf %54, %57 : vector<2x16x128xf32>
    %59 = tpu.concatenate %55, %58, %55 in 1 : vector<2x1x128xf32>, vector<2x16x128xf32>, vector<2x1x128xf32> -> vector<2x18x128xf32>
    %60 = vector.extract_strided_slice %56 {offsets = [0, 0, 0], sizes = [2, 16, 128], strides = [1, 1, 1]} : vector<2x18x128xf32> to vector<2x16x128xf32>
    %61 = vector.extract_strided_slice %56 {offsets = [0, 1, 0], sizes = [2, 16, 128], strides = [1, 1, 1]} : vector<2x18x128xf32> to vector<2x16x128xf32>
    %62 = arith.addf %60, %61 : vector<2x16x128xf32>
    %63 = vector.extract_strided_slice %56 {offsets = [0, 2, 0], sizes = [2, 16, 128], strides = [1, 1, 1]} : vector<2x18x128xf32> to vector<2x16x128xf32>
    %64 = arith.addf %62, %63 : vector<2x16x128xf32>
    %65 = vector.extract_strided_slice %59 {offsets = [0, 0, 0], sizes = [2, 16, 128], strides = [1, 1, 1]} : vector<2x18x128xf32> to vector<2x16x128xf32>
    %66 = vector.extract_strided_slice %59 {offsets = [0, 1, 0], sizes = [2, 16, 128], strides = [1, 1, 1]} : vector<2x18x128xf32> to vector<2x16x128xf32>
    %67 = arith.maximumf %65, %66 : vector<2x16x128xf32>
    %68 = vector.extract_strided_slice %59 {offsets = [0, 2, 0], sizes = [2, 16, 128], strides = [1, 1, 1]} : vector<2x18x128xf32> to vector<2x16x128xf32>
    %69 = arith.maximumf %67, %68 : vector<2x16x128xf32>
    %70 = vector.shape_cast %69 : vector<2x16x128xf32> to vector<32x128xf32>
    %c0_24 = arith.constant 0 : index
    %c0_25 = arith.constant 0 : index
    %71 = vector.load %arg6[%c0_24, %c0_25] : memref<128x256xf32, #tpu.memory_space<vmem>>, vector<128x256xf32>
    %cst_26 = arith.constant dense<0.000000e+00> : vector<32x256xf32>
    %72 = tpu.matmul %70, %71, %cst_26 {dimension_numbers = #tpu.dot_dimension_numbers<[1], [0], [0], [1], [0, 0, 1, 1], [], []>} : vector<32x128xf32>, vector<128x256xf32>, vector<32x256xf32> -> vector<32x256xf32>
    %73 = vector.shape_cast %69 : vector<2x16x128xf32> to vector<32x128xf32>
    %74 = vector.extract_strided_slice %72 {offsets = [0, 0], sizes = [32, 128], strides = [1, 1]} : vector<32x256xf32> to vector<32x128xf32>
    %75 = vector.extract_strided_slice %72 {offsets = [0, 128], sizes = [32, 128], strides = [1, 1]} : vector<32x256xf32> to vector<32x128xf32>
    %76 = arith.maximumf %74, %75 : vector<32x128xf32>
    %77 = arith.maximumf %73, %76 : vector<32x128xf32>
    %cst_27 = arith.constant 1.000000e+00 : f32
    %78 = vector.broadcast %cst_27 : f32 to vector<32x128xf32>
    %79 = arith.subf %77, %78 : vector<32x128xf32>
    %80 = vector.shape_cast %79 : vector<32x128xf32> to vector<2x16x128xf32>
    %81 = tpu.concatenate %80, %64 in 2 : vector<2x16x128xf32>, vector<2x16x128xf32> -> vector<2x16x256xf32>
    %cst_28 = arith.constant 0.000000e+00 : f32
    %82 = vector.broadcast %cst_28 : f32 to vector<2x1x256xf32>
    %83 = tpu.concatenate %82, %81, %82 in 1 : vector<2x1x256xf32>, vector<2x16x256xf32>, vector<2x1x256xf32> -> vector<2x18x256xf32>
    %84 = vector.extract_strided_slice %83 {offsets = [0, 0, 0], sizes = [2, 16, 256], strides = [1, 1, 1]} : vector<2x18x256xf32> to vector<2x16x256xf32>
    %85 = vector.extract_strided_slice %83 {offsets = [0, 1, 0], sizes = [2, 16, 256], strides = [1, 1, 1]} : vector<2x18x256xf32> to vector<2x16x256xf32>
    %86 = vector.extract_strided_slice %83 {offsets = [0, 2, 0], sizes = [2, 16, 256], strides = [1, 1, 1]} : vector<2x18x256xf32> to vector<2x16x256xf32>
    %87 = tpu.concatenate %84, %85, %86 in 2 : vector<2x16x256xf32>, vector<2x16x256xf32>, vector<2x16x256xf32> -> vector<2x16x768xf32>
    %88 = vector.shape_cast %87 : vector<2x16x768xf32> to vector<32x768xf32>
    %c0_29 = arith.constant 0 : index
    %c0_30 = arith.constant 0 : index
    %89 = vector.load %arg7[%c0_29, %c0_30] : memref<768x128xf32, #tpu.memory_space<vmem>>, vector<768x128xf32>
    %cst_31 = arith.constant dense<0.000000e+00> : vector<32x128xf32>
    %90 = tpu.matmul %88, %89, %cst_31 {dimension_numbers = #tpu.dot_dimension_numbers<[1], [0], [0], [1], [0, 0, 1, 1], [], []>} : vector<32x768xf32>, vector<768x128xf32>, vector<32x128xf32> -> vector<32x128xf32>
    %c0_32 = arith.constant 0 : index
    %c0_33 = arith.constant 0 : index
    %91 = vector.load %arg8[%c0_32, %c0_33] : memref<1x128xf32, #tpu.memory_space<vmem>>, vector<1x128xf32>
    %92 = vector.broadcast %91 : vector<1x128xf32> to vector<32x128xf32>
    %93 = arith.addf %90, %92 : vector<32x128xf32>
    %94 = vector.shape_cast %93 : vector<32x128xf32> to vector<2x16x128xf32>
    %cst_34 = arith.constant dense<0xFF800000> : vector<2x16xf32>
    %95 = vector.multi_reduction <maximumf>, %94, %cst_34 [2] : vector<2x16x128xf32> to vector<2x16xf32>
    %96 = vector.shape_cast %95 : vector<2x16xf32> to vector<2x16x1xf32>
    %cst_35 = arith.constant dense<0xFF800000> : vector<2x1xf32>
    %97 = vector.multi_reduction <maximumf>, %96, %cst_35 [1] : vector<2x16x1xf32> to vector<2x1xf32>
    %98 = vector.shape_cast %97 : vector<2x1xf32> to vector<2x1x1xf32>
    %99 = vector.broadcast %98 : vector<2x1x1xf32> to vector<2x16x128xf32>
    %100 = arith.subf %94, %99 : vector<2x16x128xf32>
    %101 = math.exp %100 : vector<2x16x128xf32>
    %cst_36 = arith.constant dense<0.000000e+00> : vector<2x16xf32>
    %102 = vector.multi_reduction <add>, %101, %cst_36 [2] : vector<2x16x128xf32> to vector<2x16xf32>
    %103 = vector.shape_cast %102 : vector<2x16xf32> to vector<2x16x1xf32>
    %cst_37 = arith.constant dense<0.000000e+00> : vector<2x1xf32>
    %104 = vector.multi_reduction <add>, %103, %cst_37 [1] : vector<2x16x1xf32> to vector<2x1xf32>
    %105 = vector.shape_cast %104 : vector<2x1xf32> to vector<2x1x1xf32>
    %106 = tpu.reciprocal %105 {approx = true} : vector<2x1x1xf32> -> vector<2x1x1xf32>
    %107 = vector.extract_strided_slice %101 {offsets = [0, 0, 0], sizes = [2, 1, 1], strides = [1, 1, 1]} : vector<2x16x128xf32> to vector<2x1x1xf32>
    %108 = arith.mulf %107, %106 : vector<2x1x1xf32>
    %109 = vector.extract_strided_slice %101 {offsets = [0, 0, 8], sizes = [2, 1, 1], strides = [1, 1, 1]} : vector<2x16x128xf32> to vector<2x1x1xf32>
    %110 = arith.mulf %109, %106 : vector<2x1x1xf32>
    %111 = vector.shape_cast %51 : vector<32x128xf32> to vector<2x16x128xf32>
    %112 = vector.broadcast %108 : vector<2x1x1xf32> to vector<2x16x128xf32>
    %113 = arith.mulf %111, %112 : vector<2x16x128xf32>
    %114 = vector.shape_cast %52 : vector<32x128xf32> to vector<2x16x128xf32>
    %115 = vector.broadcast %110 : vector<2x1x1xf32> to vector<2x16x128xf32>
    %116 = arith.mulf %114, %115 : vector<2x16x128xf32>
    %117 = arith.addf %113, %116 : vector<2x16x128xf32>
    %c0_38 = arith.constant 0 : index
    %c0_39 = arith.constant 0 : index
    %c0_40 = arith.constant 0 : index
    %118 = vector.load %arg9[%c0_38, %c0_39, %c0_40] : memref<2x16x128xf32, #tpu.memory_space<vmem>>, vector<2x16x128xf32>
    tpu.vector_store %arg9[%c0_38, %c0_39, %c0_40], %117 {strides = array<i32>} : memref<2x16x128xf32, #tpu.memory_space<vmem>>, vector<2x16x128xf32>,
    return
  }
}

</mosaic_0001>

<llo_original>
// kernel: fem_forward.1
$region0: #{fem_forward.1}
  #allocation0 [shape = 'u32[]', space=smem, size = 0x4, offset = 0x4, fixed_abs, tag = 'smem constant byte address 0x4 - core index']
  #allocation1 [shape = 'u32[144,128]{1,0:T(1,128)}', space=vmem, size = 0x12000, scoped, tag = 'internal scratch']
  %s0 = inlined_call_operand.vmem [shape: f32[2,16,128], index: 0, kind: input, shape index: {}]
  %s1 = inlined_call_operand.hbm [shape: f32[640,256], index: 1, kind: input, shape index: {}]
  %s2 = inlined_call_operand.vmem [shape: f32[1,256], index: 2, kind: input, shape index: {}]
  %s3 = inlined_call_operand.vmem [shape: f32[1,256], index: 3, kind: input, shape index: {}]
  %s4 = inlined_call_operand.vmem [shape: f32[1,256], index: 4, kind: input, shape index: {}]
  %s5 = inlined_call_operand.hbm [shape: f32[256,256], index: 5, kind: input, shape index: {}]
  %s6 = inlined_call_operand.hbm [shape: f32[128,256], index: 6, kind: input, shape index: {}]
  %s7 = inlined_call_operand.vmem [shape: f32[768,128], index: 7, kind: input, shape index: {}]
  %s8 = inlined_call_operand.vmem [shape: f32[1,128], index: 8, kind: input, shape index: {}]
  %s9 = inlined_call_operand.vmem [shape: f32[2,16,128], index: 9, kind: output, shape index: {}]
  %s10 = sld [smem:[#allocation0]]
  $region58: #{fem_forward.1} parent=0
    _
  %s12 = ssub.s32 1, %s10
  %s13 = scalar_select 0, %s12, %s10
  $region1: #{fem_forward.1} parent=0
    #allocation2 [shape = 'u8[655360]{0}', space=vmem, size = 0xa0000, scoped, tag = 'input window, operand 1, single buffered']
    #allocation3 [shape = 's32[1]{0}', space=sflag, size = 0x4, scoped, tag = 'scoped memory for fem_forward.1']
    #allocation4 [shape = 'u8[262144]{0}', space=vmem, size = 0x40000, scoped, tag = 'input window, operand 5, single buffered']
    #allocation5 [shape = 's32[1]{0}', space=sflag, size = 0x4, scoped, tag = 'scoped memory for fem_forward.1']
    #allocation6 [shape = 'u8[131072]{0}', space=vmem, size = 0x20000, scoped, tag = 'input window, operand 6, single buffered']
    %14 = vsyncpa [#allocation3], 0
    %15 = vsyncpa [#allocation5], 0
    // Predicated region
    $region2: #{fem_forward.1} parent=1 // pred_check
      _
    $region3: #{fem_forward.1} parent=1 // pred_check_branch
      %17 = sbr.rel (0) target = $region5
    $region4: #{fem_forward.1} parent=1 // pred_region
      _
    $region5: #{fem_forward.1} parent=1 // pred_fallthru
      _
    // Predicated region
    $region6: #{fem_forward.1} parent=1 // pred_check
      _
    $region7: #{fem_forward.1} parent=1 // pred_check_branch
      %19 = sbr.rel (0) target = $region9
    $region8: #{fem_forward.1} parent=1 // pred_region
      %s21 = ssub.s32 20480, 20480
      %22 = vsyncadd [#allocation3], %s21
      %s23 = sshll.u32 [#allocation2], 4
      %s24 = int_to_ptr.vmem [resolvable:$true] %s23
      %29 = dma.hbm_to_vmem [thread:$0]  %s1, 20480, %s24, [#allocation3], 256, 256, 16
    $region9: #{fem_forward.1} parent=1 // pred_fallthru
      _
    // Predicated region
    $region10: #{fem_forward.1} parent=1 // pred_check
      _
    $region11: #{fem_forward.1} parent=1 // pred_check_branch
      %31 = sbr.rel (0) target = $region13
    $region12: #{fem_forward.1} parent=1 // pred_region
      _
    $region13: #{fem_forward.1} parent=1 // pred_fallthru
      _
    // Predicated region
    $region14: #{fem_forward.1} parent=1 // pred_check
      _
    $region15: #{fem_forward.1} parent=1 // pred_check_branch
      %33 = sbr.rel (0) target = $region17
    $region16: #{fem_forward.1} parent=1 // pred_region
      _
    $region17: #{fem_forward.1} parent=1 // pred_fallthru
      _
    // Predicated region
    $region18: #{fem_forward.1} parent=1 // pred_check
      _
    $region19: #{fem_forward.1} parent=1 // pred_check_branch
      %35 = sbr.rel (0) target = $region21
    $region20: #{fem_forward.1} parent=1 // pred_region
      _
    $region21: #{fem_forward.1} parent=1 // pred_fallthru
      _
    // Predicated region
    $region22: #{fem_forward.1} parent=1 // pred_check
      _
    $region23: #{fem_forward.1} parent=1 // pred_check_branch
      %37 = sbr.rel (0) target = $region25
    $region24: #{fem_forward.1} parent=1 // pred_region
      %s39 = ssub.s32 8192, 8192
      %40 = vsyncadd [#allocation5], %s39
      %s41 = sshll.u32 [#allocation4], 4
      %s42 = int_to_ptr.vmem [resolvable:$true] %s41
      %47 = dma.hbm_to_vmem [thread:$0]  %s5, 8192, %s42, [#allocation5], 256, 256, 16
    $region25: #{fem_forward.1} parent=1 // pred_fallthru
      _
    // Predicated region
    $region26: #{fem_forward.1} parent=1 // pred_check
      _
    $region27: #{fem_forward.1} parent=1 // pred_check_branch
      %49 = sbr.rel (0) target = $region29
    $region28: #{fem_forward.1} parent=1 // pred_region
      %s51 = ssub.s32 4096, 4096
      %52 = vsyncadd [#allocation5], %s51
      %s53 = sshll.u32 [#allocation6], 4
      %s54 = int_to_ptr.vmem [resolvable:$true] %s53
      %59 = dma.hbm_to_vmem [thread:$0]  %s6, 4096, %s54, [#allocation5], 256, 256, 16
    $region29: #{fem_forward.1} parent=1 // pred_fallthru
      _
    // Predicated region
    $region30: #{fem_forward.1} parent=1 // pred_check
      _
    $region31: #{fem_forward.1} parent=1 // pred_check_branch
      %61 = sbr.rel (0) target = $region33
    $region32: #{fem_forward.1} parent=1 // pred_region
      _
    $region33: #{fem_forward.1} parent=1 // pred_fallthru
      _
    // Predicated region
    $region34: #{fem_forward.1} parent=1 // pred_check
      _
    $region35: #{fem_forward.1} parent=1 // pred_check_branch
      %63 = sbr.rel (0) target = $region37
    $region36: #{fem_forward.1} parent=1 // pred_region
      _
    $region37: #{fem_forward.1} parent=1 // pred_fallthru
      _
    // Predicated region
    $region38: #{fem_forward.1} parent=1 // pred_check
      _
    $region39: #{fem_forward.1} parent=1 // pred_check_branch
      %65 = sbr.rel (0) target = $region41
    $region40: #{fem_forward.1} parent=1 // pred_region
      %66 = dma.done [#allocation3], 20480
    $region41: #{fem_forward.1} parent=1 // pred_fallthru
      _
    // Predicated region
    $region42: #{fem_forward.1} parent=1 // pred_check
      _
    $region43: #{fem_forward.1} parent=1 // pred_check_branch
      %68 = sbr.rel (0) target = $region45
    $region44: #{fem_forward.1} parent=1 // pred_region
      %69 = dma.done [#allocation5], 8192
    $region45: #{fem_forward.1} parent=1 // pred_fallthru
      _
    // Predicated region
    $region46: #{fem_forward.1} parent=1 // pred_check
      _
    $region47: #{fem_forward.1} parent=1 // pred_check_branch
      %71 = sbr.rel (0) target = $region49
    $region48: #{fem_forward.1} parent=1 // pred_region
      %72 = dma.done [#allocation5], 4096
    $region49: #{fem_forward.1} parent=1 // pred_fallthru
      _
    %v73 = vld [vmem:[%s0] sm:$0xff]
    %v74 = vld [vmem:[%s0 + $0x8] sm:$0xff]
    %v75 = vld [vmem:[%s0 + $0x10] sm:$0xff]
    %v76 = vld [vmem:[%s0 + $0x18] sm:$0xff]
    %vm81 = vcmask 1041408
    %v82 = vrot.slane %v73, 6
    %v83 = vrot.slane %v74, 6
    %v84 = vsel %vm81, %v82, %v83
    %v85 = vrot.slane %v75, 6
    %v86 = vrot.slane %v76, 6
    %v87 = vsel %vm81, %v85, %v86
    %v94 = vsel %vm81, 0.0, %v82
    %v95 = vsel %vm81, 0.0, %v85
    %v96 = vsel %vm81, %v83, 0.0
    %v97 = vsel %vm81, %v86, 0.0
    %vm102 = vcmask 1046528
    %v103 = vrot.slane %v94, 1
    %v104 = vrot.slane %v84, 1
    %v105 = vsel %vm102, %v103, %v104
    %v106 = vrot.slane %v96, 1
    %v107 = vsel %vm102, %v104, %v106
    %v108 = vrot.slane %v95, 1
    %v109 = vrot.slane %v87, 1
    %v110 = vsel %vm102, %v108, %v109
    %v111 = vrot.slane %v97, 1
    %v112 = vsel %vm102, %v109, %v111
    %vm117 = vcmask 1045504
    %v118 = vrot.slane %v94, 2
    %v119 = vrot.slane %v84, 2
    %v120 = vsel %vm117, %v118, %v119
    %v121 = vrot.slane %v96, 2
    %v122 = vsel %vm117, %v119, %v121
    %v123 = vrot.slane %v95, 2
    %v124 = vrot.slane %v87, 2
    %v125 = vsel %vm117, %v123, %v124
    %v126 = vrot.slane %v97, 2
    %v127 = vsel %vm117, %v124, %v126
    %vm132 = vcmask 1044480
    %v133 = vrot.slane %v94, 3
    %v134 = vrot.slane %v84, 3
    %v135 = vsel %vm132, %v133, %v134
    %v136 = vrot.slane %v96, 3
    %v137 = vsel %vm132, %v134, %v136
    %v138 = vrot.slane %v95, 3
    %v139 = vrot.slane %v87, 3
    %v140 = vsel %vm132, %v138, %v139
    %v141 = vrot.slane %v97, 3
    %v142 = vsel %vm132, %v139, %v141
    %vm147 = vcmask 1043456
    %v148 = vrot.slane %v94, 4
    %v149 = vrot.slane %v84, 4
    %v150 = vsel %vm147, %v148, %v149
    %v151 = vrot.slane %v96, 4
    %v152 = vsel %vm147, %v149, %v151
    %v153 = vrot.slane %v95, 4
    %v154 = vrot.slane %v87, 4
    %v155 = vsel %vm147, %v153, %v154
    %v156 = vrot.slane %v97, 4
    %v157 = vsel %vm147, %v154, %v156
    %v162 = vld [vmem:[#allocation2] sm:$0xff]
    %v163 = vld [vmem:[#allocation2 + $0x8] sm:$0xff]
    %v164 = vld [vmem:[#allocation2 + $0x10] sm:$0xff]
    %v165 = vld [vmem:[#allocation2 + $0x18] sm:$0xff]
    %v166 = vld [vmem:[#allocation2 + $0x20] sm:$0xff]
    %v167 = vld [vmem:[#allocation2 + $0x28] sm:$0xff]
    %v168 = vld [vmem:[#allocation2 + $0x30] sm:$0xff]
    %v169 = vld [vmem:[#allocation2 + $0x38] sm:$0xff]
    %v170 = vld [vmem:[#allocation2 + $0x40] sm:$0xff]
    %v171 = vld [vmem:[#allocation2 + $0x48] sm:$0xff]
    %v172 = vld [vmem:[#allocation2 + $0x50] sm:$0xff]
    %v173 = vld [vmem:[#allocation2 + $0x58] sm:$0xff]
    %v174 = vld [vmem:[#allocation2 + $0x60] sm:$0xff]
    %v175 = vld [vmem:[#allocation2 + $0x68] sm:$0xff]
    %v176 = vld [vmem:[#allocation2 + $0x70] sm:$0xff]
    %v177 = vld [vmem:[#allocation2 + $0x78] sm:$0xff]
    %v178 = vld [vmem:[#allocation2 + $0x80] sm:$0xff]
    %v179 = vld [vmem:[#allocation2 + $0x88] sm:$0xff]
    %v180 = vld [vmem:[#allocation2 + $0x90] sm:$0xff]
    %v181 = vld [vmem:[#allocation2 + $0x98] sm:$0xff]
    %v182 = vld [vmem:[#allocation2 + $0xa0] sm:$0xff]
    %v183 = vld [vmem:[#allocation2 + $0xa8] sm:$0xff]
    %v184 = vld [vmem:[#allocation2 + $0xb0] sm:$0xff]
    %v185 = vld [vmem:[#allocation2 + $0xb8] sm:$0xff]
    %v186 = vld [vmem:[#allocation2 + $0xc0] sm:$0xff]
    %v187 = vld [vmem:[#allocation2 + $0xc8] sm:$0xff]
    %v188 = vld [vmem:[#allocation2 + $0xd0] sm:$0xff]
    %v189 = vld [vmem:[#allocation2 + $0xd8] sm:$0xff]
    %v190 = vld [vmem:[#allocation2 + $0xe0] sm:$0xff]
    %v191 = vld [vmem:[#allocation2 + $0xe8] sm:$0xff]
    %v192 = vld [vmem:[#allocation2 + $0xf0] sm:$0xff]
    %v193 = vld [vmem:[#allocation2 + $0xf8] sm:$0xff]
    %v194 = vld [vmem:[#allocation2 + $0x100] sm:$0xff]
    %v195 = vld [vmem:[#allocation2 + $0x108] sm:$0xff]
    %v196 = vld [vmem:[#allocation2 + $0x110] sm:$0xff]
    %v197 = vld [vmem:[#allocation2 + $0x118] sm:$0xff]
    %v198 = vld [vmem:[#allocation2 + $0x120] sm:$0xff]
    %v199 = vld [vmem:[#allocation2 + $0x128] sm:$0xff]
    %v200 = vld [vmem:[#allocation2 + $0x130] sm:$0xff]
    %v201 = vld [vmem:[#allocation2 + $0x138] sm:$0xff]
    %v202 = vld [vmem:[#allocation2 + $0x140] sm:$0xff]
    %v203 = vld [vmem:[#allocation2 + $0x148] sm:$0xff]
    %v204 = vld [vmem:[#allocation2 + $0x150] sm:$0xff]
    %v205 = vld [vmem:[#allocation2 + $0x158] sm:$0xff]
    %v206 = vld [vmem:[#allocation2 + $0x160] sm:$0xff]
    %v207 = vld [vmem:[#allocation2 + $0x168] sm:$0xff]
    %v208 = vld [vmem:[#allocation2 + $0x170] sm:$0xff]
    %v209 = vld [vmem:[#allocation2 + $0x178] sm:$0xff]
    %v210 = vld [vmem:[#allocation2 + $0x180] sm:$0xff]
    %v211 = vld [vmem:[#allocation2 + $0x188] sm:$0xff]
    %v212 = vld [vmem:[#allocation2 + $0x190] sm:$0xff]
    %v213 = vld [vmem:[#allocation2 + $0x198] sm:$0xff]
    %v214 = vld [vmem:[#allocation2 + $0x1a0] sm:$0xff]
    %v215 = vld [vmem:[#allocation2 + $0x1a8] sm:$0xff]
    %v216 = vld [vmem:[#allocation2 + $0x1b0] sm:$0xff]
    %v217 = vld [vmem:[#allocation2 + $0x1b8] sm:$0xff]
    %v218 = vld [vmem:[#allocation2 + $0x1c0] sm:$0xff]
    %v219 = vld [vmem:[#allocation2 + $0x1c8] sm:$0xff]
    %v220 = vld [vmem:[#allocation2 + $0x1d0] sm:$0xff]
    %v221 = vld [vmem:[#allocation2 + $0x1d8] sm:$0xff]
    %v222 = vld [vmem:[#allocation2 + $0x1e0] sm:$0xff]
    %v223 = vld [vmem:[#allocation2 + $0x1e8] sm:$0xff]
    %v224 = vld [vmem:[#allocation2 + $0x1f0] sm:$0xff]
    %v225 = vld [vmem:[#allocation2 + $0x1f8] sm:$0xff]
    %v226 = vld [vmem:[#allocation2 + $0x200] sm:$0xff]
    %v227 = vld [vmem:[#allocation2 + $0x208] sm:$0xff]
    %v228 = vld [vmem:[#allocation2 + $0x210] sm:$0xff]
    %v229 = vld [vmem:[#allocation2 + $0x218] sm:$0xff]
    %v230 = vld [vmem:[#allocation2 + $0x220] sm:$0xff]
    %v231 = vld [vmem:[#allocation2 + $0x228] sm:$0xff]
    %v232 = vld [vmem:[#allocation2 + $0x230] sm:$0xff]
    %v233 = vld [vmem:[#allocation2 + $0x238] sm:$0xff]
    %v234 = vld [vmem:[#allocation2 + $0x240] sm:$0xff]
    %v235 = vld [vmem:[#allocation2 + $0x248] sm:$0xff]
    %v236 = vld [vmem:[#allocation2 + $0x250] sm:$0xff]
    %v237 = vld [vmem:[#allocation2 + $0x258] sm:$0xff]
    %v238 = vld [vmem:[#allocation2 + $0x260] sm:$0xff]
    %v239 = vld [vmem:[#allocation2 + $0x268] sm:$0xff]
    %v240 = vld [vmem:[#allocation2 + $0x270] sm:$0xff]
    %v241 = vld [vmem:[#allocation2 + $0x278] sm:$0xff]
    %v242 = vld [vmem:[#allocation2 + $0x280] sm:$0xff]
    %v243 = vld [vmem:[#allocation2 + $0x288] sm:$0xff]
    %v244 = vld [vmem:[#allocation2 + $0x290] sm:$0xff]
    %v245 = vld [vmem:[#allocation2 + $0x298] sm:$0xff]
    %v246 = vld [vmem:[#allocation2 + $0x2a0] sm:$0xff]
    %v247 = vld [vmem:[#allocation2 + $0x2a8] sm:$0xff]
    %v248 = vld [vmem:[#allocation2 + $0x2b0] sm:$0xff]
    %v249 = vld [vmem:[#allocation2 + $0x2b8] sm:$0xff]
    %v250 = vld [vmem:[#allocation2 + $0x2c0] sm:$0xff]
    %v251 = vld [vmem:[#allocation2 + $0x2c8] sm:$0xff]
    %v252 = vld [vmem:[#allocation2 + $0x2d0] sm:$0xff]
    %v253 = vld [vmem:[#allocation2 + $0x2d8] sm:$0xff]
    %v254 = vld [vmem:[#allocation2 + $0x2e0] sm:$0xff]
    %v255 = vld [vmem:[#allocation2 + $0x2e8] sm:$0xff]
    %v256 = vld [vmem:[#allocation2 + $0x2f0] sm:$0xff]
    %v257 = vld [vmem:[#allocation2 + $0x2f8] sm:$0xff]
    %v258 = vld [vmem:[#allocation2 + $0x300] sm:$0xff]
    %v259 = vld [vmem:[#allocation2 + $0x308] sm:$0xff]
    %v260 = vld [vmem:[#allocation2 + $0x310] sm:$0xff]
    %v261 = vld [vmem:[#allocation2 + $0x318] sm:$0xff]
    %v262 = vld [vmem:[#allocation2 + $0x320] sm:$0xff]
    %v263 = vld [vmem:[#allocation2 + $0x328] sm:$0xff]
    %v264 = vld [vmem:[#allocation2 + $0x330] sm:$0xff]
    %v265 = vld [vmem:[#allocation2 + $0x338] sm:$0xff]
    %v266 = vld [vmem:[#allocation2 + $0x340] sm:$0xff]
    %v267 = vld [vmem:[#allocation2 + $0x348] sm:$0xff]
    %v268 = vld [vmem:[#allocation2 + $0x350] sm:$0xff]
    %v269 = vld [vmem:[#allocation2 + $0x358] sm:$0xff]
    %v270 = vld [vmem:[#allocation2 + $0x360] sm:$0xff]
    %v271 = vld [vmem:[#allocation2 + $0x368] sm:$0xff]
    %v272 = vld [vmem:[#allocation2 + $0x370] sm:$0xff]
    %v273 = vld [vmem:[#allocation2 + $0x378] sm:$0xff]
    %v274 = vld [vmem:[#allocation2 + $0x380] sm:$0xff]
    %v275 = vld [vmem:[#allocation2 + $0x388] sm:$0xff]
    %v276 = vld [vmem:[#allocation2 + $0x390] sm:$0xff]
    %v277 = vld [vmem:[#allocation2 + $0x398] sm:$0xff]
    %v278 = vld [vmem:[#allocation2 + $0x3a0] sm:$0xff]
    %v279 = vld [vmem:[#allocation2 + $0x3a8] sm:$0xff]
    %v280 = vld [vmem:[#allocation2 + $0x3b0] sm:$0xff]
    %v281 = vld [vmem:[#allocation2 + $0x3b8] sm:$0xff]
    %v282 = vld [vmem:[#allocation2 + $0x3c0] sm:$0xff]
    %v283 = vld [vmem:[#allocation2 + $0x3c8] sm:$0xff]
    %v284 = vld [vmem:[#allocation2 + $0x3d0] sm:$0xff]
    %v285 = vld [vmem:[#allocation2 + $0x3d8] sm:$0xff]
    %v286 = vld [vmem:[#allocation2 + $0x3e0] sm:$0xff]
    %v287 = vld [vmem:[#allocation2 + $0x3e8] sm:$0xff]
    %v288 = vld [vmem:[#allocation2 + $0x3f0] sm:$0xff]
    %v289 = vld [vmem:[#allocation2 + $0x3f8] sm:$0xff]
    %v290 = vld [vmem:[#allocation2 + $0x400] sm:$0xff]
    %v291 = vld [vmem:[#allocation2 + $0x408] sm:$0xff]
    %v292 = vld [vmem:[#allocation2 + $0x410] sm:$0xff]
    %v293 = vld [vmem:[#allocation2 + $0x418] sm:$0xff]
    %v294 = vld [vmem:[#allocation2 + $0x420] sm:$0xff]
    %v295 = vld [vmem:[#allocation2 + $0x428] sm:$0xff]
    %v296 = vld [vmem:[#allocation2 + $0x430] sm:$0xff]
    %v297 = vld [vmem:[#allocation2 + $0x438] sm:$0xff]
    %v298 = vld [vmem:[#allocation2 + $0x440] sm:$0xff]
    %v299 = vld [vmem:[#allocation2 + $0x448] sm:$0xff]
    %v300 = vld [vmem:[#allocation2 + $0x450] sm:$0xff]
    %v301 = vld [vmem:[#allocation2 + $0x458] sm:$0xff]
    %v302 = vld [vmem:[#allocation2 + $0x460] sm:$0xff]
    %v303 = vld [vmem:[#allocation2 + $0x468] sm:$0xff]
    %v304 = vld [vmem:[#allocation2 + $0x470] sm:$0xff]
    %v305 = vld [vmem:[#allocation2 + $0x478] sm:$0xff]
    %v306 = vld [vmem:[#allocation2 + $0x480] sm:$0xff]
    %v307 = vld [vmem:[#allocation2 + $0x488] sm:$0xff]
    %v308 = vld [vmem:[#allocation2 + $0x490] sm:$0xff]
    %v309 = vld [vmem:[#allocation2 + $0x498] sm:$0xff]
    %v310 = vld [vmem:[#allocation2 + $0x4a0] sm:$0xff]
    %v311 = vld [vmem:[#allocation2 + $0x4a8] sm:$0xff]
    %v312 = vld [vmem:[#allocation2 + $0x4b0] sm:$0xff]
    %v313 = vld [vmem:[#allocation2 + $0x4b8] sm:$0xff]
    %v314 = vld [vmem:[#allocation2 + $0x4c0] sm:$0xff]
    %v315 = vld [vmem:[#allocation2 + $0x4c8] sm:$0xff]
    %v316 = vld [vmem:[#allocation2 + $0x4d0] sm:$0xff]
    %v317 = vld [vmem:[#allocation2 + $0x4d8] sm:$0xff]
    %v318 = vld [vmem:[#allocation2 + $0x4e0] sm:$0xff]
    %v319 = vld [vmem:[#allocation2 + $0x4e8] sm:$0xff]
    %v320 = vld [vmem:[#allocation2 + $0x4f0] sm:$0xff]
    %v321 = vld [vmem:[#allocation2 + $0x4f8] sm:$0xff]
    %v322 = vld [vmem:[%s2] sm:$0x3]
    %v324 = vlaneseq
    %v325 = vshrl.u32 %v324, 7
    %v326 = vsub.s32 0, %v325
    %v327 = vrot.slane %v322, %v326
    %v328 = vlaneseq
    %v329 = vshrl.u32 %v328, 7
    %v330 = vsub.s32 1, %v329
    %v331 = vrot.slane %v322, %v330
    %334 = vmatprep.subr.mxu0 %v193
    %335 = vmatpush1.msra.mxu0 %v192
    %336 = vmatprep.subr.mxu0 %v191
    %337 = vmatpush1.msra.mxu0 %v190
    %338 = vmatprep.subr.mxu0 %v189
    %339 = vmatpush1.msra.mxu0 %v188
    %340 = vmatprep.subr.mxu0 %v187
    %341 = vmatpush1.msra.mxu0 %v186
    %342 = vmatprep.subr.mxu0 %v185
    %343 = vmatpush1.msra.mxu0 %v184
    %344 = vmatprep.subr.mxu0 %v183
    %345 = vmatpush1.msra.mxu0 %v182
    %346 = vmatprep.subr.mxu0 %v181
    %347 = vmatpush1.msra.mxu0 %v180
    %348 = vmatprep.subr.mxu0 %v179
    %349 = vmatpush1.msra.mxu0 %v178
    %350 = vmatprep.subr.mxu0 %v177
    %351 = vmatpush1.msra.mxu0 %v176
    %352 = vmatprep.subr.mxu0 %v175
    %353 = vmatpush1.msra.mxu0 %v174
    %354 = vmatprep.subr.mxu0 %v173
    %355 = vmatpush1.msra.mxu0 %v172
    %356 = vmatprep.subr.mxu0 %v171
    %357 = vmatpush1.msra.mxu0 %v170
    %358 = vmatprep.subr.mxu0 %v169
    %359 = vmatpush1.msra.mxu0 %v168
    %360 = vmatprep.subr.mxu0 %v167
    %361 = vmatpush1.msra.mxu0 %v166
    %362 = vmatprep.subr.mxu0 %v165
    %363 = vmatpush1.msra.mxu0 %v164
    %364 = vmatprep.subr.mxu0 %v163
    %365 = vmatpush1.msra.mxu0 %v162
    %366 = vmatprep.subr.mxu0 %v225
    %367 = vmatpush2.msra.mxu0 %v224
    %368 = vmatprep.subr.mxu0 %v223
    %369 = vmatpush2.msra.mxu0 %v222
    %370 = vmatprep.subr.mxu0 %v221
    %371 = vmatpush2.msra.mxu0 %v220
    %372 = vmatprep.subr.mxu0 %v219
    %373 = vmatpush2.msra.mxu0 %v218
    %374 = vmatprep.subr.mxu0 %v217
    %375 = vmatpush2.msra.mxu0 %v216
    %376 = vmatprep.subr.mxu0 %v215
    %377 = vmatpush2.msra.mxu0 %v214
    %378 = vmatprep.subr.mxu0 %v213
    %379 = vmatpush2.msra.mxu0 %v212
    %380 = vmatprep.subr.mxu0 %v211
    %381 = vmatpush2.msra.mxu0 %v210
    %382 = vmatprep.subr.mxu0 %v209
    %383 = vmatpush2.msra.mxu0 %v208
    %384 = vmatprep.subr.mxu0 %v207
    %385 = vmatpush2.msra.mxu0 %v206
    %386 = vmatprep.subr.mxu0 %v205
    %387 = vmatpush2.msra.mxu0 %v204
    %388 = vmatprep.subr.mxu0 %v203
    %389 = vmatpush2.msra.mxu0 %v202
    %390 = vmatprep.subr.mxu0 %v201
    %391 = vmatpush2.msra.mxu0 %v200
    %392 = vmatprep.subr.mxu0 %v199
    %393 = vmatpush2.msra.mxu0 %v198
    %394 = vmatprep.subr.mxu0 %v197
    %395 = vmatpush2.msra.mxu0 %v196
    %396 = vmatprep.subr.mxu0 %v195
    %397 = vmatpush2.msra.mxu0 %v194
    %398 = vmatprep.mubr.f32.mxu0 %v105
    %399 = vmatmul.mubr.f32.gmra.mxu0 %v94
    %v400 = vpop.f32.mrf.mxu0
    %v401 = vadd.f32 %v327, %v400
    %v402 = vpop.f32.mrf.mxu0
    %v403 = vadd.f32 %v331, %v402
    %404 = vmatprep.mubr.f32.mxu0 %v107
    %405 = vmatmul.mubr.f32.gmra.mxu0 %v84
    %v406 = vpop.f32.mrf.mxu0
    %v407 = vadd.f32 %v327, %v406
    %v408 = vpop.f32.mrf.mxu0
    %v409 = vadd.f32 %v331, %v408
    %410 = vmatprep.mubr.f32.mxu0 %v110
    %411 = vmatmul.mubr.f32.gmra.mxu0 %v95
    %v412 = vpop.f32.mrf.mxu0
    %v413 = vadd.f32 %v327, %v412
    %v414 = vpop.f32.mrf.mxu0
    %v415 = vadd.f32 %v331, %v414
    %416 = vmatprep.mubr.f32.mxu0 %v112
    %417 = vmatmul.mubr.f32.gmra.mxu0 %v87
    %v418 = vpop.f32.mrf.mxu0
    %v419 = vadd.f32 %v327, %v418
    %v420 = vpop.f32.mrf.mxu0
    %v421 = vadd.f32 %v331, %v420
    %422 = vdwg.mxu0
    %423 = vmatprep.subr.mxu0 %v257
    %424 = vmatpush1.msra.mxu0 %v256
    %425 = vmatprep.subr.mxu0 %v255
    %426 = vmatpush1.msra.mxu0 %v254
    %427 = vmatprep.subr.mxu0 %v253
    %428 = vmatpush1.msra.mxu0 %v252
    %429 = vmatprep.subr.mxu0 %v251
    %430 = vmatpush1.msra.mxu0 %v250
    %431 = vmatprep.subr.mxu0 %v249
    %432 = vmatpush1.msra.mxu0 %v248
    %433 = vmatprep.subr.mxu0 %v247
    %434 = vmatpush1.msra.mxu0 %v246
    %435 = vmatprep.subr.mxu0 %v245
    %436 = vmatpush1.msra.mxu0 %v244
    %437 = vmatprep.subr.mxu0 %v243
    %438 = vmatpush1.msra.mxu0 %v242
    %439 = vmatprep.subr.mxu0 %v241
    %440 = vmatpush1.msra.mxu0 %v240
    %441 = vmatprep.subr.mxu0 %v239
    %442 = vmatpush1.msra.mxu0 %v238
    %443 = vmatprep.subr.mxu0 %v237
    %444 = vmatpush1.msra.mxu0 %v236
    %445 = vmatprep.subr.mxu0 %v235
    %446 = vmatpush1.msra.mxu0 %v234
    %447 = vmatprep.subr.mxu0 %v233
    %448 = vmatpush1.msra.mxu0 %v232
    %449 = vmatprep.subr.mxu0 %v231
    %450 = vmatpush1.msra.mxu0 %v230
    %451 = vmatprep.subr.mxu0 %v229
    %452 = vmatpush1.msra.mxu0 %v228
    %453 = vmatprep.subr.mxu0 %v227
    %454 = vmatpush1.msra.mxu0 %v226
    %455 = vmatprep.subr.mxu0 %v289
    %456 = vmatpush2.msra.mxu0 %v288
    %457 = vmatprep.subr.mxu0 %v287
    %458 = vmatpush2.msra.mxu0 %v286
    %459 = vmatprep.subr.mxu0 %v285
    %460 = vmatpush2.msra.mxu0 %v284
    %461 = vmatprep.subr.mxu0 %v283
    %462 = vmatpush2.msra.mxu0 %v282
    %463 = vmatprep.subr.mxu0 %v281
    %464 = vmatpush2.msra.mxu0 %v280
    %465 = vmatprep.subr.mxu0 %v279
    %466 = vmatpush2.msra.mxu0 %v278
    %467 = vmatprep.subr.mxu0 %v277
    %468 = vmatpush2.msra.mxu0 %v276
    %469 = vmatprep.subr.mxu0 %v275
    %470 = vmatpush2.msra.mxu0 %v274
    %471 = vmatprep.subr.mxu0 %v273
    %472 = vmatpush2.msra.mxu0 %v272
    %473 = vmatprep.subr.mxu0 %v271
    %474 = vmatpush2.msra.mxu0 %v270
    %475 = vmatprep.subr.mxu0 %v269
    %476 = vmatpush2.msra.mxu0 %v268
    %477 = vmatprep.subr.mxu0 %v267
    %478 = vmatpush2.msra.mxu0 %v266
    %479 = vmatprep.subr.mxu0 %v265
    %480 = vmatpush2.msra.mxu0 %v264
    %481 = vmatprep.subr.mxu0 %v263
    %482 = vmatpush2.msra.mxu0 %v262
    %483 = vmatprep.subr.mxu0 %v261
    %484 = vmatpush2.msra.mxu0 %v260
    %485 = vmatprep.subr.mxu0 %v259
    %486 = vmatpush2.msra.mxu0 %v258
    %487 = vmatprep.mubr.f32.mxu0 %v135
    %488 = vmatmul.mubr.f32.gmra.mxu0 %v120
    %v489 = vpop.f32.mrf.mxu0
    %v490 = vadd.f32 %v401, %v489
    %v491 = vpop.f32.mrf.mxu0
    %v492 = vadd.f32 %v403, %v491
    %493 = vmatprep.mubr.f32.mxu0 %v137
    %494 = vmatmul.mubr.f32.gmra.mxu0 %v122
    %v495 = vpop.f32.mrf.mxu0
    %v496 = vadd.f32 %v407, %v495
    %v497 = vpop.f32.mrf.mxu0
    %v498 = vadd.f32 %v409, %v497
    %499 = vmatprep.mubr.f32.mxu0 %v140
    %500 = vmatmul.mubr.f32.gmra.mxu0 %v125
    %v501 = vpop.f32.mrf.mxu0
    %v502 = vadd.f32 %v413, %v501
    %v503 = vpop.f32.mrf.mxu0
    %v504 = vadd.f32 %v415, %v503
    %505 = vmatprep.mubr.f32.mxu0 %v142
    %506 = vmatmul.mubr.f32.gmra.mxu0 %v127
    %v507 = vpop.f32.mrf.mxu0
    %v508 = vadd.f32 %v419, %v507
    %v509 = vpop.f32.mrf.mxu0
    %v510 = vadd.f32 %v421, %v509
    %511 = vdwg.mxu0
    %512 = vmatprep.subr.mxu0 %v321
    %513 = vmatpush1.msra.mxu0 %v320
    %514 = vmatprep.subr.mxu0 %v319
    %515 = vmatpush1.msra.mxu0 %v318
    %516 = vmatprep.subr.mxu0 %v317
    %517 = vmatpush1.msra.mxu0 %v316
    %518 = vmatprep.subr.mxu0 %v315
    %519 = vmatpush1.msra.mxu0 %v314
    %520 = vmatprep.subr.mxu0 %v313
    %521 = vmatpush1.msra.mxu0 %v312
    %522 = vmatprep.subr.mxu0 %v311
    %523 = vmatpush1.msra.mxu0 %v310
    %524 = vmatprep.subr.mxu0 %v309
    %525 = vmatpush1.msra.mxu0 %v308
    %526 = vmatprep.subr.mxu0 %v307
    %527 = vmatpush1.msra.mxu0 %v306
    %528 = vmatprep.subr.mxu0 %v305
    %529 = vmatpush1.msra.mxu0 %v304
    %530 = vmatprep.subr.mxu0 %v303
    %531 = vmatpush1.msra.mxu0 %v302
    %532 = vmatprep.subr.mxu0 %v301
    %533 = vmatpush1.msra.mxu0 %v300
    %534 = vmatprep.subr.mxu0 %v299
    %535 = vmatpush1.msra.mxu0 %v298
    %536 = vmatprep.subr.mxu0 %v297
    %537 = vmatpush1.msra.mxu0 %v296
    %538 = vmatprep.subr.mxu0 %v295
    %539 = vmatpush1.msra.mxu0 %v294
    %540 = vmatprep.subr.mxu0 %v293
    %541 = vmatpush1.msra.mxu0 %v292
    %542 = vmatprep.subr.mxu0 %v291
    %543 = vmatpush1.msra.mxu0 %v290
    %544 = vmatprep.subr.mxu0 0.0
    %545 = vmatpush2.msra.mxu0 0.0
    %546 = vmatprep.subr.mxu0 0.0
    %547 = vmatpush2.msra.mxu0 0.0
    %548 = vmatprep.subr.mxu0 0.0
    %549 = vmatpush2.msra.mxu0 0.0
    %550 = vmatprep.subr.mxu0 0.0
    %551 = vmatpush2.msra.mxu0 0.0
    %552 = vmatprep.subr.mxu0 0.0
    %553 = vmatpush2.msra.mxu0 0.0
    %554 = vmatprep.subr.mxu0 0.0
    %555 = vmatpush2.msra.mxu0 0.0
    %556 = vmatprep.subr.mxu0 0.0
    %557 = vmatpush2.msra.mxu0 0.0
    %558 = vmatprep.subr.mxu0 0.0
    %559 = vmatpush2.msra.mxu0 0.0
    %560 = vmatprep.subr.mxu0 0.0
    %561 = vmatpush2.msra.mxu0 0.0
    %562 = vmatprep.subr.mxu0 0.0
    %563 = vmatpush2.msra.mxu0 0.0
    %564 = vmatprep.subr.mxu0 0.0
    %565 = vmatpush2.msra.mxu0 0.0
    %566 = vmatprep.subr.mxu0 0.0
    %567 = vmatpush2.msra.mxu0 0.0
    %568 = vmatprep.subr.mxu0 0.0
    %569 = vmatpush2.msra.mxu0 0.0
    %570 = vmatprep.subr.mxu0 0.0
    %571 = vmatpush2.msra.mxu0 0.0
    %572 = vmatprep.subr.mxu0 0.0
    %573 = vmatpush2.msra.mxu0 0.0
    %574 = vmatprep.subr.mxu0 0.0
    %575 = vmatpush2.msra.mxu0 0.0
    %576 = vmatprep.mubr.f32.mxu0 0.0
    %577 = vmatmul.mubr.f32.gmra.mxu0 %v150
    %v578 = vpop.f32.mrf.mxu0
    %v579 = vadd.f32 %v490, %v578
    %v580 = vpop.f32.mrf.mxu0
    %v581 = vadd.f32 %v492, %v580
    %582 = vmatprep.mubr.f32.mxu0 0.0
    %583 = vmatmul.mubr.f32.gmra.mxu0 %v152
    %v584 = vpop.f32.mrf.mxu0
    %v585 = vadd.f32 %v496, %v584
    %v586 = vpop.f32.mrf.mxu0
    %v587 = vadd.f32 %v498, %v586
    %588 = vmatprep.mubr.f32.mxu0 0.0
    %589 = vmatmul.mubr.f32.gmra.mxu0 %v155
    %v590 = vpop.f32.mrf.mxu0
    %v591 = vadd.f32 %v502, %v590
    %v592 = vpop.f32.mrf.mxu0
    %v593 = vadd.f32 %v504, %v592
    %594 = vmatprep.mubr.f32.mxu0 0.0
    %595 = vmatmul.mubr.f32.gmra.mxu0 %v157
    %v596 = vpop.f32.mrf.mxu0
    %v597 = vadd.f32 %v508, %v596
    %v598 = vpop.f32.mrf.mxu0
    %v599 = vadd.f32 %v510, %v598
    %600 = vdwg.mxu0
    %v601 = vadd.f32 %v579, %v585
    %v602 = vadd.f32 %v601, %v591
    %v603 = vadd.f32 %v602, %v597
    %v604 = vrot.slane %v603, 4
    %v605 = vadd.f32 %v603, %v604
    %v606 = vrot.slane %v605, 2
    %v607 = vadd.f32 %v605, %v606
    %v608 = vrot.slane %v607, 1
    %v609 = vadd.f32 %v607, %v608
    %v610 = vadd.f32 %v581, %v587
    %v611 = vadd.f32 %v610, %v593
    %v612 = vadd.f32 %v611, %v599
    %v613 = vrot.slane %v612, 4
    %v614 = vadd.f32 %v612, %v613
    %v615 = vrot.slane %v614, 2
    %v616 = vadd.f32 %v614, %v615
    %v617 = vrot.slane %v616, 1
    %v618 = vadd.f32 %v616, %v617
    %v619 = vmul.f32 %v579, %v579
    %v620 = vmul.f32 %v581, %v581
    %v621 = vmul.f32 %v585, %v585
    %v622 = vmul.f32 %v587, %v587
    %v623 = vmul.f32 %v591, %v591
    %v624 = vmul.f32 %v593, %v593
    %v625 = vmul.f32 %v597, %v597
    %v626 = vmul.f32 %v599, %v599
    %v627 = vadd.f32 %v619, %v621
    %v628 = vadd.f32 %v627, %v623
    %v629 = vadd.f32 %v628, %v625
    %v630 = vrot.slane %v629, 4
    %v631 = vadd.f32 %v629, %v630
    %v632 = vrot.slane %v631, 2
    %v633 = vadd.f32 %v631, %v632
    %v634 = vrot.slane %v633, 1
    %v635 = vadd.f32 %v633, %v634
    %v636 = vadd.f32 %v620, %v622
    %v637 = vadd.f32 %v636, %v624
    %v638 = vadd.f32 %v637, %v626
    %v639 = vrot.slane %v638, 4
    %v640 = vadd.f32 %v638, %v639
    %v641 = vrot.slane %v640, 2
    %v642 = vadd.f32 %v640, %v641
    %v643 = vrot.slane %v642, 1
    %v644 = vadd.f32 %v642, %v643
    %vm645 = vcmask 1040384
    %v646 = vsel %vm645, %v609, %v635
    %v647 = vsel %vm645, %v618, %v644
    %v648 = vld [vmem:[#allocation4] sm:$0xff]
    %v649 = vld [vmem:[#allocation4 + $0x8] sm:$0xff]
    %v650 = vld [vmem:[#allocation4 + $0x10] sm:$0xff]
    %v651 = vld [vmem:[#allocation4 + $0x18] sm:$0xff]
    %v652 = vld [vmem:[#allocation4 + $0x20] sm:$0xff]
    %v653 = vld [vmem:[#allocation4 + $0x28] sm:$0xff]
    %v654 = vld [vmem:[#allocation4 + $0x30] sm:$0xff]
    %v655 = vld [vmem:[#allocation4 + $0x38] sm:$0xff]
    %v656 = vld [vmem:[#allocation4 + $0x40] sm:$0xff]
    %v657 = vld [vmem:[#allocation4 + $0x48] sm:$0xff]
    %v658 = vld [vmem:[#allocation4 + $0x50] sm:$0xff]
    %v659 = vld [vmem:[#allocation4 + $0x58] sm:$0xff]
    %v660 = vld [vmem:[#allocation4 + $0x60] sm:$0xff]
    %v661 = vld [vmem:[#allocation4 + $0x68] sm:$0xff]
    %v662 = vld [vmem:[#allocation4 + $0x70] sm:$0xff]
    %v663 = vld [vmem:[#allocation4 + $0x78] sm:$0xff]
    %v664 = vld [vmem:[#allocation4 + $0x80] sm:$0xff]
    %v665 = vld [vmem:[#allocation4 + $0x88] sm:$0xff]
    %v666 = vld [vmem:[#allocation4 + $0x90] sm:$0xff]
    %v667 = vld [vmem:[#allocation4 + $0x98] sm:$0xff]
    %v668 = vld [vmem:[#allocation4 + $0xa0] sm:$0xff]
    %v669 = vld [vmem:[#allocation4 + $0xa8] sm:$0xff]
    %v670 = vld [vmem:[#allocation4 + $0xb0] sm:$0xff]
    %v671 = vld [vmem:[#allocation4 + $0xb8] sm:$0xff]
    %v672 = vld [vmem:[#allocation4 + $0xc0] sm:$0xff]
    %v673 = vld [vmem:[#allocation4 + $0xc8] sm:$0xff]
    %v674 = vld [vmem:[#allocation4 + $0xd0] sm:$0xff]
    %v675 = vld [vmem:[#allocation4 + $0xd8] sm:$0xff]
    %v676 = vld [vmem:[#allocation4 + $0xe0] sm:$0xff]
    %v677 = vld [vmem:[#allocation4 + $0xe8] sm:$0xff]
    %v678 = vld [vmem:[#allocation4 + $0xf0] sm:$0xff]
    %v679 = vld [vmem:[#allocation4 + $0xf8] sm:$0xff]
    %v680 = vld [vmem:[#allocation4 + $0x100] sm:$0xff]
    %v681 = vld [vmem:[#allocation4 + $0x108] sm:$0xff]
    %v682 = vld [vmem:[#allocation4 + $0x110] sm:$0xff]
    %v683 = vld [vmem:[#allocation4 + $0x118] sm:$0xff]
    %v684 = vld [vmem:[#allocation4 + $0x120] sm:$0xff]
    %v685 = vld [vmem:[#allocation4 + $0x128] sm:$0xff]
    %v686 = vld [vmem:[#allocation4 + $0x130] sm:$0xff]
    %v687 = vld [vmem:[#allocation4 + $0x138] sm:$0xff]
    %v688 = vld [vmem:[#allocation4 + $0x140] sm:$0xff]
    %v689 = vld [vmem:[#allocation4 + $0x148] sm:$0xff]
    %v690 = vld [vmem:[#allocation4 + $0x150] sm:$0xff]
    %v691 = vld [vmem:[#allocation4 + $0x158] sm:$0xff]
    %v692 = vld [vmem:[#allocation4 + $0x160] sm:$0xff]
    %v693 = vld [vmem:[#allocation4 + $0x168] sm:$0xff]
    %v694 = vld [vmem:[#allocation4 + $0x170] sm:$0xff]
    %v695 = vld [vmem:[#allocation4 + $0x178] sm:$0xff]
    %v696 = vld [vmem:[#allocation4 + $0x180] sm:$0xff]
    %v697 = vld [vmem:[#allocation4 + $0x188] sm:$0xff]
    %v698 = vld [vmem:[#allocation4 + $0x190] sm:$0xff]
    %v699 = vld [vmem:[#allocation4 + $0x198] sm:$0xff]
    %v700 = vld [vmem:[#allocation4 + $0x1a0] sm:$0xff]
    %v701 = vld [vmem:[#allocation4 + $0x1a8] sm:$0xff]
    %v702 = vld [vmem:[#allocation4 + $0x1b0] sm:$0xff]
    %v703 = vld [vmem:[#allocation4 + $0x1b8] sm:$0xff]
    %v704 = vld [vmem:[#allocation4 + $0x1c0] sm:$0xff]
    %v705 = vld [vmem:[#allocation4 + $0x1c8] sm:$0xff]
    %v706 = vld [vmem:[#allocation4 + $0x1d0] sm:$0xff]
    %v707 = vld [vmem:[#allocation4 + $0x1d8] sm:$0xff]
    %v708 = vld [vmem:[#allocation4 + $0x1e0] sm:$0xff]
    %v709 = vld [vmem:[#allocation4 + $0x1e8] sm:$0xff]
    %v710 = vld [vmem:[#allocation4 + $0x1f0] sm:$0xff]
    %v711 = vld [vmem:[#allocation4 + $0x1f8] sm:$0xff]
    %712 = vmatprep.subr.mxu0 %v679
    %713 = vmatpush1.msra.mxu0 %v678
    %714 = vmatprep.subr.mxu0 %v677
    %715 = vmatpush1.msra.mxu0 %v676
    %716 = vmatprep.subr.mxu0 %v675
    %717 = vmatpush1.msra.mxu0 %v674
    %718 = vmatprep.subr.mxu0 %v673
    %719 = vmatpush1.msra.mxu0 %v672
    %720 = vmatprep.subr.mxu0 %v671
    %721 = vmatpush1.msra.mxu0 %v670
    %722 = vmatprep.subr.mxu0 %v669
    %723 = vmatpush1.msra.mxu0 %v668
    %724 = vmatprep.subr.mxu0 %v667
    %725 = vmatpush1.msra.mxu0 %v666
    %726 = vmatprep.subr.mxu0 %v665
    %727 = vmatpush1.msra.mxu0 %v664
    %728 = vmatprep.subr.mxu0 %v663
    %729 = vmatpush1.msra.mxu0 %v662
    %730 = vmatprep.subr.mxu0 %v661
    %731 = vmatpush1.msra.mxu0 %v660
    %732 = vmatprep.subr.mxu0 %v659
    %733 = vmatpush1.msra.mxu0 %v658
    %734 = vmatprep.subr.mxu0 %v657
    %735 = vmatpush1.msra.mxu0 %v656
    %736 = vmatprep.subr.mxu0 %v655
    %737 = vmatpush1.msra.mxu0 %v654
    %738 = vmatprep.subr.mxu0 %v653
    %739 = vmatpush1.msra.mxu0 %v652
    %740 = vmatprep.subr.mxu0 %v651
    %741 = vmatpush1.msra.mxu0 %v650
    %742 = vmatprep.subr.mxu0 %v649
    %743 = vmatpush1.msra.mxu0 %v648
    %744 = vmatprep.subr.mxu0 %v711
    %745 = vmatpush2.msra.mxu0 %v710
    %746 = vmatprep.subr.mxu0 %v709
    %747 = vmatpush2.msra.mxu0 %v708
    %748 = vmatprep.subr.mxu0 %v707
    %749 = vmatpush2.msra.mxu0 %v706
    %750 = vmatprep.subr.mxu0 %v705
    %751 = vmatpush2.msra.mxu0 %v704
    %752 = vmatprep.subr.mxu0 %v703
    %753 = vmatpush2.msra.mxu0 %v702
    %754 = vmatprep.subr.mxu0 %v701
    %755 = vmatpush2.msra.mxu0 %v700
    %756 = vmatprep.subr.mxu0 %v699
    %757 = vmatpush2.msra.mxu0 %v698
    %758 = vmatprep.subr.mxu0 %v697
    %759 = vmatpush2.msra.mxu0 %v696
    %760 = vmatprep.subr.mxu0 %v695
    %761 = vmatpush2.msra.mxu0 %v694
    %762 = vmatprep.subr.mxu0 %v693
    %763 = vmatpush2.msra.mxu0 %v692
    %764 = vmatprep.subr.mxu0 %v691
    %765 = vmatpush2.msra.mxu0 %v690
    %766 = vmatprep.subr.mxu0 %v689
    %767 = vmatpush2.msra.mxu0 %v688
    %768 = vmatprep.subr.mxu0 %v687
    %769 = vmatpush2.msra.mxu0 %v686
    %770 = vmatprep.subr.mxu0 %v685
    %771 = vmatpush2.msra.mxu0 %v684
    %772 = vmatprep.subr.mxu0 %v683
    %773 = vmatpush2.msra.mxu0 %v682
    %774 = vmatprep.subr.mxu0 %v681
    %775 = vmatpush2.msra.mxu0 %v680
    %776 = vmatprep.mubr.f32.mxu0 %v647
    %777 = vmatmul.mubr.f32.gmra.mxu0 %v646
    %v778 = vpop.f32.mrf.mxu0
    %v779 = vadd.f32 0.0, %v778
    %v780 = vpop.f32.mrf.mxu0
    %v781 = vadd.f32 0.0, %v780
    %782 = vdwg.mxu0
    %v783 = vmul.f32 %v779, 0.001953125
    %v784 = vmul.f32 %v781, 0.001953125
    %v785 = vmul.f32 %v783, %v783
    %v786 = vmul.f32 %v784, %v784
    %v789 = vrot.slane %v785, 7
    %v790 = vrot.slane %v786, 7
    %v793 = vsub.f32 %v783, %v789
    %v794 = vsub.f32 %v784, %v790
    %v795 = vld [vmem:[%s3] sm:$0x3]
    %v796 = vadd.f32 %v793, 1e-05
    %v797 = vadd.f32 %v794, 1e-05
    %v798 = vrsqrt.pop %v796
    %v799 = vrsqrt.pop %v797
    %v802 = vcombine.low %v798, %v799
    %v804 = vunpack.c.l.s4 1966171168
    %v805 = vunpack.c.0.s8 %v804
    %v806 = vlaneseq
    %v807 = vshrl.u32 %v806, 7
    %v808 = vsub.s32 %v805, %v807
    %v809 = vrot.slane %v802, %v808
    %v810 = vcombine.high %v809, %v809
    %v812 = vunpack.c.l.s4 1966171168
    %v813 = vunpack.c.0.s8 %v812
    %v814 = vlaneseq
    %v815 = vshrl.u32 %v814, 7
    %v816 = vsub.s32 %v813, %v815
    %v817 = vrot.slane %v810, %v816
    %v819 = vmul.f32 %v795, %v817
    %v820 = vld [vmem:[%s4] sm:$0x3]
    %v822 = vlaneseq
    %v823 = vshrl.u32 %v822, 7
    %v824 = vsub.s32 0, %v823
    %v825 = vrot.slane %v819, %v824
    %v826 = vlaneseq
    %v827 = vshrl.u32 %v826, 7
    %v828 = vsub.s32 1, %v827
    %v829 = vrot.slane %v819, %v828
    %v832 = vmul.f32 %v783, %v825
    %v833 = vmul.f32 %v784, %v829
    %v836 = vcombine.low %v832, %v833
    %v838 = vunpack.c.l.s4 1966171168
    %v839 = vunpack.c.0.s8 %v838
    %v840 = vlaneseq
    %v841 = vshrl.u32 %v840, 7
    %v842 = vsub.s32 %v839, %v841
    %v843 = vrot.slane %v836, %v842
    %v845 = vunpack.c.l.s4 1966171168
    %v846 = vunpack.c.0.s8 %v845
    %v847 = vlaneseq
    %v848 = vshrl.u32 %v847, 7
    %v849 = vsub.s32 %v846, %v848
    %v850 = vrot.slane %v843, %v849
    %v852 = vsub.f32 %v820, %v850
    %v853 = vmul.f32 %v579, %v825
    %v854 = vmul.f32 %v581, %v829
    %v855 = vmul.f32 %v585, %v825
    %v856 = vmul.f32 %v587, %v829
    %v857 = vmul.f32 %v591, %v825
    %v858 = vmul.f32 %v593, %v829
    %v859 = vmul.f32 %v597, %v825
    %v860 = vmul.f32 %v599, %v829
    %v862 = vlaneseq
    %v863 = vshrl.u32 %v862, 7
    %v864 = vsub.s32 0, %v863
    %v865 = vrot.slane %v852, %v864
    %v866 = vlaneseq
    %v867 = vshrl.u32 %v866, 7
    %v868 = vsub.s32 1, %v867
    %v869 = vrot.slane %v852, %v868
    %v872 = vadd.f32 %v853, %v865
    %v873 = vadd.f32 %v854, %v869
    %v874 = vadd.f32 %v855, %v865
    %v875 = vadd.f32 %v856, %v869
    %v876 = vadd.f32 %v857, %v865
    %v877 = vadd.f32 %v858, %v869
    %v878 = vadd.f32 %v859, %v865
    %v879 = vadd.f32 %v860, %v869
    %v880 = vsub.f32 0.0, %v872
    %v881 = vsub.f32 0.0, %v873
    %v882 = vsub.f32 0.0, %v874
    %v883 = vsub.f32 0.0, %v875
    %v884 = vsub.f32 0.0, %v876
    %v885 = vsub.f32 0.0, %v877
    %v886 = vsub.f32 0.0, %v878
    %v887 = vsub.f32 0.0, %v879
    %v888 = vmul.f32 %v880, 1.442695
    %v889 = vpow.pop %v888
    %v890 = vmul.f32 %v881, 1.442695
    %v891 = vpow.pop %v890
    %v892 = vmul.f32 %v882, 1.442695
    %v893 = vpow.pop %v892
    %v894 = vmul.f32 %v883, 1.442695
    %v895 = vpow.pop %v894
    %v896 = vmul.f32 %v884, 1.442695
    %v897 = vpow.pop %v896
    %v898 = vmul.f32 %v885, 1.442695
    %v899 = vpow.pop %v898
    %v900 = vmul.f32 %v886, 1.442695
    %v901 = vpow.pop %v900
    %v902 = vmul.f32 %v887, 1.442695
    %v903 = vpow.pop %v902
    %v904 = vadd.f32 %v889, 1.0
    %v905 = vadd.f32 %v891, 1.0
    %v906 = vadd.f32 %v893, 1.0
    %v907 = vadd.f32 %v895, 1.0
    %v908 = vadd.f32 %v897, 1.0
    %v909 = vadd.f32 %v899, 1.0
    %v910 = vadd.f32 %v901, 1.0
    %v911 = vadd.f32 %v903, 1.0
    %v912 = vrcp.pop %v904
    %v913 = vmul.f32 1.0, %v912
    %v914 = vrcp.pop %v905
    %v915 = vmul.f32 1.0, %v914
    %v916 = vrcp.pop %v906
    %v917 = vmul.f32 1.0, %v916
    %v918 = vrcp.pop %v907
    %v919 = vmul.f32 1.0, %v918
    %v920 = vrcp.pop %v908
    %v921 = vmul.f32 1.0, %v920
    %v922 = vrcp.pop %v909
    %v923 = vmul.f32 1.0, %v922
    %v924 = vrcp.pop %v910
    %v925 = vmul.f32 1.0, %v924
    %v926 = vrcp.pop %v911
    %v927 = vmul.f32 1.0, %v926
    %v928 = vmul.f32 %v872, %v913
    %v929 = vmul.f32 %v873, %v915
    %v930 = vmul.f32 %v874, %v917
    %v931 = vmul.f32 %v875, %v919
    %v932 = vmul.f32 %v876, %v921
    %v933 = vmul.f32 %v877, %v923
    %v934 = vmul.f32 %v878, %v925
    %v935 = vmul.f32 %v879, %v927
    %v936 = vadd.f32 %v928, %v929
    %v937 = vadd.f32 %v930, %v931
    %v938 = vadd.f32 %v932, %v933
    %v939 = vadd.f32 %v934, %v935
    %v944 = vrot.slane %v936, 7
    %v945 = vrot.slane %v937, 7
    %v946 = vsel %vm645, %v944, %v945
    %v947 = vrot.slane %v938, 7
    %v948 = vrot.slane %v939, 7
    %v949 = vsel %vm645, %v947, %v948
    %v956 = vsel %vm645, 0.0, %v944
    %v957 = vsel %vm645, 0.0, %v947
    %v958 = vsel %vm645, %v945, 0.0
    %v959 = vsel %vm645, %v948, 0.0
    %v960 = vadd.f32 %v936, 1.0
    %v961 = vadd.f32 %v937, 1.0
    %v962 = vadd.f32 %v938, 1.0
    %v963 = vadd.f32 %v939, 1.0
    %v968 = vrot.slane %v960, 7
    %v969 = vrot.slane %v961, 7
    %v970 = vsel %vm645, %v968, %v969
    %v971 = vrot.slane %v962, 7
    %v972 = vrot.slane %v963, 7
    %v973 = vsel %vm645, %v971, %v972
    %v980 = vsel %vm645, 0.0, %v968
    %v981 = vsel %vm645, 0.0, %v971
    %v982 = vsel %vm645, %v969, 0.0
    %v983 = vsel %vm645, %v972, 0.0
    %v988 = vrot.slane %v956, 1
    %v989 = vrot.slane %v946, 1
    %v990 = vsel %vm102, %v988, %v989
    %v991 = vrot.slane %v958, 1
    %v992 = vsel %vm102, %v989, %v991
    %v993 = vrot.slane %v957, 1
    %v994 = vrot.slane %v949, 1
    %v995 = vsel %vm102, %v993, %v994
    %v996 = vrot.slane %v959, 1
    %v997 = vsel %vm102, %v994, %v996
    %v1002 = vadd.f32 %v956, %v990
    %v1003 = vadd.f32 %v946, %v992
    %v1004 = vadd.f32 %v957, %v995
    %v1005 = vadd.f32 %v949, %v997
    %v1006 = vrot.slane %v956, 2
    %v1007 = vrot.slane %v946, 2
    %v1008 = vsel %vm117, %v1006, %v1007
    %v1009 = vrot.slane %v958, 2
    %v1010 = vsel %vm117, %v1007, %v1009
    %v1011 = vrot.slane %v957, 2
    %v1012 = vrot.slane %v949, 2
    %v1013 = vsel %vm117, %v1011, %v1012
    %v1014 = vrot.slane %v959, 2
    %v1015 = vsel %vm117, %v1012, %v1014
    %v1020 = vadd.f32 %v1002, %v1008
    %v1021 = vadd.f32 %v1003, %v1010
    %v1022 = vadd.f32 %v1004, %v1013
    %v1023 = vadd.f32 %v1005, %v1015
    %v1028 = vrot.slane %v980, 1
    %v1029 = vrot.slane %v970, 1
    %v1030 = vsel %vm102, %v1028, %v1029
    %v1031 = vrot.slane %v982, 1
    %v1032 = vsel %vm102, %v1029, %v1031
    %v1033 = vrot.slane %v981, 1
    %v1034 = vrot.slane %v973, 1
    %v1035 = vsel %vm102, %v1033, %v1034
    %v1036 = vrot.slane %v983, 1
    %v1037 = vsel %vm102, %v1034, %v1036
    %v1042 = vmax.f32 %v980, %v1030
    %v1043 = vmax.f32 %v970, %v1032
    %v1044 = vmax.f32 %v981, %v1035
    %v1045 = vmax.f32 %v973, %v1037
    %v1046 = vrot.slane %v980, 2
    %v1047 = vrot.slane %v970, 2
    %v1048 = vsel %vm117, %v1046, %v1047
    %v1049 = vrot.slane %v982, 2
    %v1050 = vsel %vm117, %v1047, %v1049
    %v1051 = vrot.slane %v981, 2
    %v1052 = vrot.slane %v973, 2
    %v1053 = vsel %vm117, %v1051, %v1052
    %v1054 = vrot.slane %v983, 2
    %v1055 = vsel %vm117, %v1052, %v1054
    %v1060 = vmax.f32 %v1042, %v1048
    %v1061 = vmax.f32 %v1043, %v1050
    %v1062 = vmax.f32 %v1044, %v1053
    %v1063 = vmax.f32 %v1045, %v1055
    %v1064 = vld [vmem:[#allocation6] sm:$0xff]
    %v1065 = vld [vmem:[#allocation6 + $0x8] sm:$0xff]
    %v1066 = vld [vmem:[#allocation6 + $0x10] sm:$0xff]
    %v1067 = vld [vmem:[#allocation6 + $0x18] sm:$0xff]
    %v1068 = vld [vmem:[#allocation6 + $0x20] sm:$0xff]
    %v1069 = vld [vmem:[#allocation6 + $0x28] sm:$0xff]
    %v1070 = vld [vmem:[#allocation6 + $0x30] sm:$0xff]
    %v1071 = vld [vmem:[#allocation6 + $0x38] sm:$0xff]
    %v1072 = vld [vmem:[#allocation6 + $0x40] sm:$0xff]
    %v1073 = vld [vmem:[#allocation6 + $0x48] sm:$0xff]
    %v1074 = vld [vmem:[#allocation6 + $0x50] sm:$0xff]
    %v1075 = vld [vmem:[#allocation6 + $0x58] sm:$0xff]
    %v1076 = vld [vmem:[#allocation6 + $0x60] sm:$0xff]
    %v1077 = vld [vmem:[#allocation6 + $0x68] sm:$0xff]
    %v1078 = vld [vmem:[#allocation6 + $0x70] sm:$0xff]
    %v1079 = vld [vmem:[#allocation6 + $0x78] sm:$0xff]
    %v1080 = vld [vmem:[#allocation6 + $0x80] sm:$0xff]
    %v1081 = vld [vmem:[#allocation6 + $0x88] sm:$0xff]
    %v1082 = vld [vmem:[#allocation6 + $0x90] sm:$0xff]
    %v1083 = vld [vmem:[#allocation6 + $0x98] sm:$0xff]
    %v1084 = vld [vmem:[#allocation6 + $0xa0] sm:$0xff]
    %v1085 = vld [vmem:[#allocation6 + $0xa8] sm:$0xff]
    %v1086 = vld [vmem:[#allocation6 + $0xb0] sm:$0xff]
    %v1087 = vld [vmem:[#allocation6 + $0xb8] sm:$0xff]
    %v1088 = vld [vmem:[#allocation6 + $0xc0] sm:$0xff]
    %v1089 = vld [vmem:[#allocation6 + $0xc8] sm:$0xff]
    %v1090 = vld [vmem:[#allocation6 + $0xd0] sm:$0xff]
    %v1091 = vld [vmem:[#allocation6 + $0xd8] sm:$0xff]
    %v1092 = vld [vmem:[#allocation6 + $0xe0] sm:$0xff]
    %v1093 = vld [vmem:[#allocation6 + $0xe8] sm:$0xff]
    %v1094 = vld [vmem:[#allocation6 + $0xf0] sm:$0xff]
    %v1095 = vld [vmem:[#allocation6 + $0xf8] sm:$0xff]
    %1096 = vmatprep.subr.mxu0 %v1095
    %1097 = vmatpush1.msra.mxu0 %v1094
    %1098 = vmatprep.subr.mxu0 %v1093
    %1099 = vmatpush1.msra.mxu0 %v1092
    %1100 = vmatprep.subr.mxu0 %v1091
    %1101 = vmatpush1.msra.mxu0 %v1090
    %1102 = vmatprep.subr.mxu0 %v1089
    %1103 = vmatpush1.msra.mxu0 %v1088
    %1104 = vmatprep.subr.mxu0 %v1087
    %1105 = vmatpush1.msra.mxu0 %v1086
    %1106 = vmatprep.subr.mxu0 %v1085
    %1107 = vmatpush1.msra.mxu0 %v1084
    %1108 = vmatprep.subr.mxu0 %v1083
    %1109 = vmatpush1.msra.mxu0 %v1082
    %1110 = vmatprep.subr.mxu0 %v1081
    %1111 = vmatpush1.msra.mxu0 %v1080
    %1112 = vmatprep.subr.mxu0 %v1079
    %1113 = vmatpush1.msra.mxu0 %v1078
    %1114 = vmatprep.subr.mxu0 %v1077
    %1115 = vmatpush1.msra.mxu0 %v1076
    %1116 = vmatprep.subr.mxu0 %v1075
    %1117 = vmatpush1.msra.mxu0 %v1074
    %1118 = vmatprep.subr.mxu0 %v1073
    %1119 = vmatpush1.msra.mxu0 %v1072
    %1120 = vmatprep.subr.mxu0 %v1071
    %1121 = vmatpush1.msra.mxu0 %v1070
    %1122 = vmatprep.subr.mxu0 %v1069
    %1123 = vmatpush1.msra.mxu0 %v1068
    %1124 = vmatprep.subr.mxu0 %v1067
    %1125 = vmatpush1.msra.mxu0 %v1066
    %1126 = vmatprep.subr.mxu0 %v1065
    %1127 = vmatpush1.msra.mxu0 %v1064
    %1128 = vmatprep.subr.mxu0 0.0
    %1129 = vmatpush2.msra.mxu0 0.0
    %1130 = vmatprep.subr.mxu0 0.0
    %1131 = vmatpush2.msra.mxu0 0.0
    %1132 = vmatprep.subr.mxu0 0.0
    %1133 = vmatpush2.msra.mxu0 0.0
    %1134 = vmatprep.subr.mxu0 0.0
    %1135 = vmatpush2.msra.mxu0 0.0
    %1136 = vmatprep.subr.mxu0 0.0
    %1137 = vmatpush2.msra.mxu0 0.0
    %1138 = vmatprep.subr.mxu0 0.0
    %1139 = vmatpush2.msra.mxu0 0.0
    %1140 = vmatprep.subr.mxu0 0.0
    %1141 = vmatpush2.msra.mxu0 0.0
    %1142 = vmatprep.subr.mxu0 0.0
    %1143 = vmatpush2.msra.mxu0 0.0
    %1144 = vmatprep.subr.mxu0 0.0
    %1145 = vmatpush2.msra.mxu0 0.0
    %1146 = vmatprep.subr.mxu0 0.0
    %1147 = vmatpush2.msra.mxu0 0.0
    %1148 = vmatprep.subr.mxu0 0.0
    %1149 = vmatpush2.msra.mxu0 0.0
    %1150 = vmatprep.subr.mxu0 0.0
    %1151 = vmatpush2.msra.mxu0 0.0
    %1152 = vmatprep.subr.mxu0 0.0
    %1153 = vmatpush2.msra.mxu0 0.0
    %1154 = vmatprep.subr.mxu0 0.0
    %1155 = vmatpush2.msra.mxu0 0.0
    %1156 = vmatprep.subr.mxu0 0.0
    %1157 = vmatpush2.msra.mxu0 0.0
    %1158 = vmatprep.subr.mxu0 0.0
    %1159 = vmatpush2.msra.mxu0 0.0
    %1160 = vmatprep.mubr.f32.mxu0 0.0
    %1161 = vmatmul.mubr.f32.gmra.mxu0 %v1060
    %v1162 = vpop.f32.mrf.mxu0
    %v1163 = vadd.f32 0.0, %v1162
    %v1164 = vpop.f32.mrf.mxu0
    %v1165 = vadd.f32 0.0, %v1164
    %1166 = vmatprep.mubr.f32.mxu0 0.0
    %1167 = vmatmul.mubr.f32.gmra.mxu0 %v1061
    %v1168 = vpop.f32.mrf.mxu0
    %v1169 = vadd.f32 0.0, %v1168
    %v1170 = vpop.f32.mrf.mxu0
    %v1171 = vadd.f32 0.0, %v1170
    %1172 = vmatprep.mubr.f32.mxu0 0.0
    %1173 = vmatmul.mubr.f32.gmra.mxu0 %v1062
    %v1174 = vpop.f32.mrf.mxu0
    %v1175 = vadd.f32 0.0, %v1174
    %v1176 = vpop.f32.mrf.mxu0
    %v1177 = vadd.f32 0.0, %v1176
    %1178 = vmatprep.mubr.f32.mxu0 0.0
    %1179 = vmatmul.mubr.f32.gmra.mxu0 %v1063
    %v1180 = vpop.f32.mrf.mxu0
    %v1181 = vadd.f32 0.0, %v1180
    %v1182 = vpop.f32.mrf.mxu0
    %v1183 = vadd.f32 0.0, %v1182
    %1184 = vdwg.mxu0
    %v1185 = vmax.f32 %v1163, %v1165
    %v1186 = vmax.f32 %v1169, %v1171
    %v1187 = vmax.f32 %v1175, %v1177
    %v1188 = vmax.f32 %v1181, %v1183
    %v1189 = vmax.f32 %v1060, %v1185
    %v1190 = vmax.f32 %v1061, %v1186
    %v1191 = vmax.f32 %v1062, %v1187
    %v1192 = vmax.f32 %v1063, %v1188
    %v1193 = vsub.f32 %v1189, 1.0
    %v1194 = vsub.f32 %v1190, 1.0
    %v1195 = vsub.f32 %v1191, 1.0
    %v1196 = vsub.f32 %v1192, 1.0
    %v1205 = vrot.slane %v1193, 7
    %v1206 = vrot.slane %v1020, 7
    %v1207 = vrot.slane %v1194, 7
    %v1208 = vsel %vm645, %v1205, %v1207
    %v1209 = vrot.slane %v1021, 7
    %v1210 = vsel %vm645, %v1206, %v1209
    %v1211 = vrot.slane %v1195, 7
    %v1212 = vrot.slane %v1022, 7
    %v1213 = vrot.slane %v1196, 7
    %v1214 = vsel %vm645, %v1211, %v1213
    %v1215 = vrot.slane %v1023, 7
    %v1216 = vsel %vm645, %v1212, %v1215
    %v1229 = vsel %vm645, 0.0, %v1205
    %v1230 = vsel %vm645, 0.0, %v1206
    %v1231 = vsel %vm645, 0.0, %v1211
    %v1232 = vsel %vm645, 0.0, %v1212
    %v1233 = vsel %vm645, %v1207, 0.0
    %v1234 = vsel %vm645, %v1209, 0.0
    %v1235 = vsel %vm645, %v1213, 0.0
    %v1236 = vsel %vm645, %v1215, 0.0
    %v1245 = vrot.slane %v1229, 1
    %v1246 = vrot.slane %v1208, 1
    %v1247 = vsel %vm102, %v1245, %v1246
    %v1248 = vrot.slane %v1230, 1
    %v1249 = vrot.slane %v1210, 1
    %v1250 = vsel %vm102, %v1248, %v1249
    %v1251 = vrot.slane %v1233, 1
    %v1252 = vsel %vm102, %v1246, %v1251
    %v1253 = vrot.slane %v1234, 1
    %v1254 = vsel %vm102, %v1249, %v1253
    %v1255 = vrot.slane %v1231, 1
    %v1256 = vrot.slane %v1214, 1
    %v1257 = vsel %vm102, %v1255, %v1256
    %v1258 = vrot.slane %v1232, 1
    %v1259 = vrot.slane %v1216, 1
    %v1260 = vsel %vm102, %v1258, %v1259
    %v1261 = vrot.slane %v1235, 1
    %v1262 = vsel %vm102, %v1256, %v1261
    %v1263 = vrot.slane %v1236, 1
    %v1264 = vsel %vm102, %v1259, %v1263
    %v1273 = vrot.slane %v1229, 2
    %v1274 = vrot.slane %v1208, 2
    %v1275 = vsel %vm117, %v1273, %v1274
    %v1276 = vrot.slane %v1230, 2
    %v1277 = vrot.slane %v1210, 2
    %v1278 = vsel %vm117, %v1276, %v1277
    %v1279 = vrot.slane %v1233, 2
    %v1280 = vsel %vm117, %v1274, %v1279
    %v1281 = vrot.slane %v1234, 2
    %v1282 = vsel %vm117, %v1277, %v1281
    %v1283 = vrot.slane %v1231, 2
    %v1284 = vrot.slane %v1214, 2
    %v1285 = vsel %vm117, %v1283, %v1284
    %v1286 = vrot.slane %v1232, 2
    %v1287 = vrot.slane %v1216, 2
    %v1288 = vsel %vm117, %v1286, %v1287
    %v1289 = vrot.slane %v1235, 2
    %v1290 = vsel %vm117, %v1284, %v1289
    %v1291 = vrot.slane %v1236, 2
    %v1292 = vsel %vm117, %v1287, %v1291
    %v1301 = vld [vmem:[%s7] sm:$0xff]
    %v1302 = vld [vmem:[%s7 + $0x8] sm:$0xff]
    %v1303 = vld [vmem:[%s7 + $0x10] sm:$0xff]
    %v1304 = vld [vmem:[%s7 + $0x18] sm:$0xff]
    %v1305 = vld [vmem:[%s7 + $0x20] sm:$0xff]
    %v1306 = vld [vmem:[%s7 + $0x28] sm:$0xff]
    %v1307 = vld [vmem:[%s7 + $0x30] sm:$0xff]
    %v1308 = vld [vmem:[%s7 + $0x38] sm:$0xff]
    %v1309 = vld [vmem:[%s7 + $0x40] sm:$0xff]
    %v1310 = vld [vmem:[%s7 + $0x48] sm:$0xff]
    %v1311 = vld [vmem:[%s7 + $0x50] sm:$0xff]
    %v1312 = vld [vmem:[%s7 + $0x58] sm:$0xff]
    %v1313 = vld [vmem:[%s7 + $0x60] sm:$0xff]
    %v1314 = vld [vmem:[%s7 + $0x68] sm:$0xff]
    %v1315 = vld [vmem:[%s7 + $0x70] sm:$0xff]
    %v1316 = vld [vmem:[%s7 + $0x78] sm:$0xff]
    %v1317 = vld [vmem:[%s7 + $0x80] sm:$0xff]
    %v1318 = vld [vmem:[%s7 + $0x88] sm:$0xff]
    %v1319 = vld [vmem:[%s7 + $0x90] sm:$0xff]
    %v1320 = vld [vmem:[%s7 + $0x98] sm:$0xff]
    %v1321 = vld [vmem:[%s7 + $0xa0] sm:$0xff]
    %v1322 = vld [vmem:[%s7 + $0xa8] sm:$0xff]
    %v1323 = vld [vmem:[%s7 + $0xb0] sm:$0xff]
    %v1324 = vld [vmem:[%s7 + $0xb8] sm:$0xff]
    %v1325 = vld [vmem:[%s7 + $0xc0] sm:$0xff]
    %v1326 = vld [vmem:[%s7 + $0xc8] sm:$0xff]
    %v1327 = vld [vmem:[%s7 + $0xd0] sm:$0xff]
    %v1328 = vld [vmem:[%s7 + $0xd8] sm:$0xff]
    %v1329 = vld [vmem:[%s7 + $0xe0] sm:$0xff]
    %v1330 = vld [vmem:[%s7 + $0xe8] sm:$0xff]
    %v1331 = vld [vmem:[%s7 + $0xf0] sm:$0xff]
    %v1332 = vld [vmem:[%s7 + $0xf8] sm:$0xff]
    %v1333 = vld [vmem:[%s7 + $0x100] sm:$0xff]
    %v1334 = vld [vmem:[%s7 + $0x108] sm:$0xff]
    %v1335 = vld [vmem:[%s7 + $0x110] sm:$0xff]
    %v1336 = vld [vmem:[%s7 + $0x118] sm:$0xff]
    %v1337 = vld [vmem:[%s7 + $0x120] sm:$0xff]
    %v1338 = vld [vmem:[%s7 + $0x128] sm:$0xff]
    %v1339 = vld [vmem:[%s7 + $0x130] sm:$0xff]
    %v1340 = vld [vmem:[%s7 + $0x138] sm:$0xff]
    %v1341 = vld [vmem:[%s7 + $0x140] sm:$0xff]
    %v1342 = vld [vmem:[%s7 + $0x148] sm:$0xff]
    %v1343 = vld [vmem:[%s7 + $0x150] sm:$0xff]
    %v1344 = vld [vmem:[%s7 + $0x158] sm:$0xff]
    %v1345 = vld [vmem:[%s7 + $0x160] sm:$0xff]
    %v1346 = vld [vmem:[%s7 + $0x168] sm:$0xff]
    %v1347 = vld [vmem:[%s7 + $0x170] sm:$0xff]
    %v1348 = vld [vmem:[%s7 + $0x178] sm:$0xff]
    %v1349 = vld [vmem:[%s7 + $0x180] sm:$0xff]
    %v1350 = vld [vmem:[%s7 + $0x188] sm:$0xff]
    %v1351 = vld [vmem:[%s7 + $0x190] sm:$0xff]
    %v1352 = vld [vmem:[%s7 + $0x198] sm:$0xff]
    %v1353 = vld [vmem:[%s7 + $0x1a0] sm:$0xff]
    %v1354 = vld [vmem:[%s7 + $0x1a8] sm:$0xff]
    %v1355 = vld [vmem:[%s7 + $0x1b0] sm:$0xff]
    %v1356 = vld [vmem:[%s7 + $0x1b8] sm:$0xff]
    %v1357 = vld [vmem:[%s7 + $0x1c0] sm:$0xff]
    %v1358 = vld [vmem:[%s7 + $0x1c8] sm:$0xff]
    %v1359 = vld [vmem:[%s7 + $0x1d0] sm:$0xff]
    %v1360 = vld [vmem:[%s7 + $0x1d8] sm:$0xff]
    %v1361 = vld [vmem:[%s7 + $0x1e0] sm:$0xff]
    %v1362 = vld [vmem:[%s7 + $0x1e8] sm:$0xff]
    %v1363 = vld [vmem:[%s7 + $0x1f0] sm:$0xff]
    %v1364 = vld [vmem:[%s7 + $0x1f8] sm:$0xff]
    %v1365 = vld [vmem:[%s7 + $0x200] sm:$0xff]
    %v1366 = vld [vmem:[%s7 + $0x208] sm:$0xff]
    %v1367 = vld [vmem:[%s7 + $0x210] sm:$0xff]
    %v1368 = vld [vmem:[%s7 + $0x218] sm:$0xff]
    %v1369 = vld [vmem:[%s7 + $0x220] sm:$0xff]
    %v1370 = vld [vmem:[%s7 + $0x228] sm:$0xff]
    %v1371 = vld [vmem:[%s7 + $0x230] sm:$0xff]
    %v1372 = vld [vmem:[%s7 + $0x238] sm:$0xff]
    %v1373 = vld [vmem:[%s7 + $0x240] sm:$0xff]
    %v1374 = vld [vmem:[%s7 + $0x248] sm:$0xff]
    %v1375 = vld [vmem:[%s7 + $0x250] sm:$0xff]
    %v1376 = vld [vmem:[%s7 + $0x258] sm:$0xff]
    %v1377 = vld [vmem:[%s7 + $0x260] sm:$0xff]
    %v1378 = vld [vmem:[%s7 + $0x268] sm:$0xff]
    %v1379 = vld [vmem:[%s7 + $0x270] sm:$0xff]
    %v1380 = vld [vmem:[%s7 + $0x278] sm:$0xff]
    %v1381 = vld [vmem:[%s7 + $0x280] sm:$0xff]
    %v1382 = vld [vmem:[%s7 + $0x288] sm:$0xff]
    %v1383 = vld [vmem:[%s7 + $0x290] sm:$0xff]
    %v1384 = vld [vmem:[%s7 + $0x298] sm:$0xff]
    %v1385 = vld [vmem:[%s7 + $0x2a0] sm:$0xff]
    %v1386 = vld [vmem:[%s7 + $0x2a8] sm:$0xff]
    %v1387 = vld [vmem:[%s7 + $0x2b0] sm:$0xff]
    %v1388 = vld [vmem:[%s7 + $0x2b8] sm:$0xff]
    %v1389 = vld [vmem:[%s7 + $0x2c0] sm:$0xff]
    %v1390 = vld [vmem:[%s7 + $0x2c8] sm:$0xff]
    %v1391 = vld [vmem:[%s7 + $0x2d0] sm:$0xff]
    %v1392 = vld [vmem:[%s7 + $0x2d8] sm:$0xff]
    %v1393 = vld [vmem:[%s7 + $0x2e0] sm:$0xff]
    %v1394 = vld [vmem:[%s7 + $0x2e8] sm:$0xff]
    %v1395 = vld [vmem:[%s7 + $0x2f0] sm:$0xff]
    %v1396 = vld [vmem:[%s7 + $0x2f8] sm:$0xff]
    %v1397 = vld [vmem:[%s8] sm:$0x1]
    %v1399 = vlaneseq
    %v1400 = vshrl.u32 %v1399, 7
    %v1401 = vsub.s32 0, %v1400
    %v1402 = vrot.slane %v1397, %v1401
    %1404 = vmatprep.subr.mxu0 0.0
    %1405 = vmatpush1.msra.mxu0 %v1316
    %1406 = vmatprep.subr.mxu0 0.0
    %1407 = vmatpush1.msra.mxu0 %v1315
    %1408 = vmatprep.subr.mxu0 0.0
    %1409 = vmatpush1.msra.mxu0 %v1314
    %1410 = vmatprep.subr.mxu0 0.0
    %1411 = vmatpush1.msra.mxu0 %v1313
    %1412 = vmatprep.subr.mxu0 0.0
    %1413 = vmatpush1.msra.mxu0 %v1312
    %1414 = vmatprep.subr.mxu0 0.0
    %1415 = vmatpush1.msra.mxu0 %v1311
    %1416 = vmatprep.subr.mxu0 0.0
    %1417 = vmatpush1.msra.mxu0 %v1310
    %1418 = vmatprep.subr.mxu0 0.0
    %1419 = vmatpush1.msra.mxu0 %v1309
    %1420 = vmatprep.subr.mxu0 0.0
    %1421 = vmatpush1.msra.mxu0 %v1308
    %1422 = vmatprep.subr.mxu0 0.0
    %1423 = vmatpush1.msra.mxu0 %v1307
    %1424 = vmatprep.subr.mxu0 0.0
    %1425 = vmatpush1.msra.mxu0 %v1306
    %1426 = vmatprep.subr.mxu0 0.0
    %1427 = vmatpush1.msra.mxu0 %v1305
    %1428 = vmatprep.subr.mxu0 0.0
    %1429 = vmatpush1.msra.mxu0 %v1304
    %1430 = vmatprep.subr.mxu0 0.0
    %1431 = vmatpush1.msra.mxu0 %v1303
    %1432 = vmatprep.subr.mxu0 0.0
    %1433 = vmatpush1.msra.mxu0 %v1302
    %1434 = vmatprep.subr.mxu0 0.0
    %1435 = vmatpush1.msra.mxu0 %v1301
    %1436 = vmatprep.subr.mxu0 0.0
    %1437 = vmatpush2.msra.mxu0 %v1332
    %1438 = vmatprep.subr.mxu0 0.0
    %1439 = vmatpush2.msra.mxu0 %v1331
    %1440 = vmatprep.subr.mxu0 0.0
    %1441 = vmatpush2.msra.mxu0 %v1330
    %1442 = vmatprep.subr.mxu0 0.0
    %1443 = vmatpush2.msra.mxu0 %v1329
    %1444 = vmatprep.subr.mxu0 0.0
    %1445 = vmatpush2.msra.mxu0 %v1328
    %1446 = vmatprep.subr.mxu0 0.0
    %1447 = vmatpush2.msra.mxu0 %v1327
    %1448 = vmatprep.subr.mxu0 0.0
    %1449 = vmatpush2.msra.mxu0 %v1326
    %1450 = vmatprep.subr.mxu0 0.0
    %1451 = vmatpush2.msra.mxu0 %v1325
    %1452 = vmatprep.subr.mxu0 0.0
    %1453 = vmatpush2.msra.mxu0 %v1324
    %1454 = vmatprep.subr.mxu0 0.0
    %1455 = vmatpush2.msra.mxu0 %v1323
    %1456 = vmatprep.subr.mxu0 0.0
    %1457 = vmatpush2.msra.mxu0 %v1322
    %1458 = vmatprep.subr.mxu0 0.0
    %1459 = vmatpush2.msra.mxu0 %v1321
    %1460 = vmatprep.subr.mxu0 0.0
    %1461 = vmatpush2.msra.mxu0 %v1320
    %1462 = vmatprep.subr.mxu0 0.0
    %1463 = vmatpush2.msra.mxu0 %v1319
    %1464 = vmatprep.subr.mxu0 0.0
    %1465 = vmatpush2.msra.mxu0 %v1318
    %1466 = vmatprep.subr.mxu0 0.0
    %1467 = vmatpush2.msra.mxu0 %v1317
    %1468 = vmatprep.mubr.f32.mxu0 %v1230
    %1469 = vmatmul.mubr.f32.gmra.mxu0 %v1229
    %v1470 = vpop.f32.mrf.mxu0
    %v1471 = vadd.f32 %v1402, %v1470
    %v1472 = vpop.f32.mrf.mxu0
    %1473 = vmatprep.mubr.f32.mxu0 %v1210
    %1474 = vmatmul.mubr.f32.gmra.mxu0 %v1208
    %v1475 = vpop.f32.mrf.mxu0
    %v1476 = vadd.f32 %v1402, %v1475
    %v1477 = vpop.f32.mrf.mxu0
    %1478 = vmatprep.mubr.f32.mxu0 %v1232
    %1479 = vmatmul.mubr.f32.gmra.mxu0 %v1231
    %v1480 = vpop.f32.mrf.mxu0
    %v1481 = vadd.f32 %v1402, %v1480
    %v1482 = vpop.f32.mrf.mxu0
    %1483 = vmatprep.mubr.f32.mxu0 %v1216
    %1484 = vmatmul.mubr.f32.gmra.mxu0 %v1214
    %v1485 = vpop.f32.mrf.mxu0
    %v1486 = vadd.f32 %v1402, %v1485
    %v1487 = vpop.f32.mrf.mxu0
    %1488 = vdwg.mxu0
    %1489 = vmatprep.subr.mxu0 0.0
    %1490 = vmatpush1.msra.mxu0 %v1348
    %1491 = vmatprep.subr.mxu0 0.0
    %1492 = vmatpush1.msra.mxu0 %v1347
    %1493 = vmatprep.subr.mxu0 0.0
    %1494 = vmatpush1.msra.mxu0 %v1346
    %1495 = vmatprep.subr.mxu0 0.0
    %1496 = vmatpush1.msra.mxu0 %v1345
    %1497 = vmatprep.subr.mxu0 0.0
    %1498 = vmatpush1.msra.mxu0 %v1344
    %1499 = vmatprep.subr.mxu0 0.0
    %1500 = vmatpush1.msra.mxu0 %v1343
    %1501 = vmatprep.subr.mxu0 0.0
    %1502 = vmatpush1.msra.mxu0 %v1342
    %1503 = vmatprep.subr.mxu0 0.0
    %1504 = vmatpush1.msra.mxu0 %v1341
    %1505 = vmatprep.subr.mxu0 0.0
    %1506 = vmatpush1.msra.mxu0 %v1340
    %1507 = vmatprep.subr.mxu0 0.0
    %1508 = vmatpush1.msra.mxu0 %v1339
    %1509 = vmatprep.subr.mxu0 0.0
    %1510 = vmatpush1.msra.mxu0 %v1338
    %1511 = vmatprep.subr.mxu0 0.0
    %1512 = vmatpush1.msra.mxu0 %v1337
    %1513 = vmatprep.subr.mxu0 0.0
    %1514 = vmatpush1.msra.mxu0 %v1336
    %1515 = vmatprep.subr.mxu0 0.0
    %1516 = vmatpush1.msra.mxu0 %v1335
    %1517 = vmatprep.subr.mxu0 0.0
    %1518 = vmatpush1.msra.mxu0 %v1334
    %1519 = vmatprep.subr.mxu0 0.0
    %1520 = vmatpush1.msra.mxu0 %v1333
    %1521 = vmatprep.subr.mxu0 0.0
    %1522 = vmatpush2.msra.mxu0 %v1364
    %1523 = vmatprep.subr.mxu0 0.0
    %1524 = vmatpush2.msra.mxu0 %v1363
    %1525 = vmatprep.subr.mxu0 0.0
    %1526 = vmatpush2.msra.mxu0 %v1362
    %1527 = vmatprep.subr.mxu0 0.0
    %1528 = vmatpush2.msra.mxu0 %v1361
    %1529 = vmatprep.subr.mxu0 0.0
    %1530 = vmatpush2.msra.mxu0 %v1360
    %1531 = vmatprep.subr.mxu0 0.0
    %1532 = vmatpush2.msra.mxu0 %v1359
    %1533 = vmatprep.subr.mxu0 0.0
    %1534 = vmatpush2.msra.mxu0 %v1358
    %1535 = vmatprep.subr.mxu0 0.0
    %1536 = vmatpush2.msra.mxu0 %v1357
    %1537 = vmatprep.subr.mxu0 0.0
    %1538 = vmatpush2.msra.mxu0 %v1356
    %1539 = vmatprep.subr.mxu0 0.0
    %1540 = vmatpush2.msra.mxu0 %v1355
    %1541 = vmatprep.subr.mxu0 0.0
    %1542 = vmatpush2.msra.mxu0 %v1354
    %1543 = vmatprep.subr.mxu0 0.0
    %1544 = vmatpush2.msra.mxu0 %v1353
    %1545 = vmatprep.subr.mxu0 0.0
    %1546 = vmatpush2.msra.mxu0 %v1352
    %1547 = vmatprep.subr.mxu0 0.0
    %1548 = vmatpush2.msra.mxu0 %v1351
    %1549 = vmatprep.subr.mxu0 0.0
    %1550 = vmatpush2.msra.mxu0 %v1350
    %1551 = vmatprep.subr.mxu0 0.0
    %1552 = vmatpush2.msra.mxu0 %v1349
    %1553 = vmatprep.mubr.f32.mxu0 %v1250
    %1554 = vmatmul.mubr.f32.gmra.mxu0 %v1247
    %v1555 = vpop.f32.mrf.mxu0
    %v1556 = vadd.f32 %v1471, %v1555
    %v1557 = vpop.f32.mrf.mxu0
    %1558 = vmatprep.mubr.f32.mxu0 %v1254
    %1559 = vmatmul.mubr.f32.gmra.mxu0 %v1252
    %v1560 = vpop.f32.mrf.mxu0
    %v1561 = vadd.f32 %v1476, %v1560
    %v1562 = vpop.f32.mrf.mxu0
    %1563 = vmatprep.mubr.f32.mxu0 %v1260
    %1564 = vmatmul.mubr.f32.gmra.mxu0 %v1257
    %v1565 = vpop.f32.mrf.mxu0
    %v1566 = vadd.f32 %v1481, %v1565
    %v1567 = vpop.f32.mrf.mxu0
    %1568 = vmatprep.mubr.f32.mxu0 %v1264
    %1569 = vmatmul.mubr.f32.gmra.mxu0 %v1262
    %v1570 = vpop.f32.mrf.mxu0
    %v1571 = vadd.f32 %v1486, %v1570
    %v1572 = vpop.f32.mrf.mxu0
    %1573 = vdwg.mxu0
    %1574 = vmatprep.subr.mxu0 0.0
    %1575 = vmatpush1.msra.mxu0 %v1380
    %1576 = vmatprep.subr.mxu0 0.0
    %1577 = vmatpush1.msra.mxu0 %v1379
    %1578 = vmatprep.subr.mxu0 0.0
    %1579 = vmatpush1.msra.mxu0 %v1378
    %1580 = vmatprep.subr.mxu0 0.0
    %1581 = vmatpush1.msra.mxu0 %v1377
    %1582 = vmatprep.subr.mxu0 0.0
    %1583 = vmatpush1.msra.mxu0 %v1376
    %1584 = vmatprep.subr.mxu0 0.0
    %1585 = vmatpush1.msra.mxu0 %v1375
    %1586 = vmatprep.subr.mxu0 0.0
    %1587 = vmatpush1.msra.mxu0 %v1374
    %1588 = vmatprep.subr.mxu0 0.0
    %1589 = vmatpush1.msra.mxu0 %v1373
    %1590 = vmatprep.subr.mxu0 0.0
    %1591 = vmatpush1.msra.mxu0 %v1372
    %1592 = vmatprep.subr.mxu0 0.0
    %1593 = vmatpush1.msra.mxu0 %v1371
    %1594 = vmatprep.subr.mxu0 0.0
    %1595 = vmatpush1.msra.mxu0 %v1370
    %1596 = vmatprep.subr.mxu0 0.0
    %1597 = vmatpush1.msra.mxu0 %v1369
    %1598 = vmatprep.subr.mxu0 0.0
    %1599 = vmatpush1.msra.mxu0 %v1368
    %1600 = vmatprep.subr.mxu0 0.0
    %1601 = vmatpush1.msra.mxu0 %v1367
    %1602 = vmatprep.subr.mxu0 0.0
    %1603 = vmatpush1.msra.mxu0 %v1366
    %1604 = vmatprep.subr.mxu0 0.0
    %1605 = vmatpush1.msra.mxu0 %v1365
    %1606 = vmatprep.subr.mxu0 0.0
    %1607 = vmatpush2.msra.mxu0 %v1396
    %1608 = vmatprep.subr.mxu0 0.0
    %1609 = vmatpush2.msra.mxu0 %v1395
    %1610 = vmatprep.subr.mxu0 0.0
    %1611 = vmatpush2.msra.mxu0 %v1394
    %1612 = vmatprep.subr.mxu0 0.0
    %1613 = vmatpush2.msra.mxu0 %v1393
    %1614 = vmatprep.subr.mxu0 0.0
    %1615 = vmatpush2.msra.mxu0 %v1392
    %1616 = vmatprep.subr.mxu0 0.0
    %1617 = vmatpush2.msra.mxu0 %v1391
    %1618 = vmatprep.subr.mxu0 0.0
    %1619 = vmatpush2.msra.mxu0 %v1390
    %1620 = vmatprep.subr.mxu0 0.0
    %1621 = vmatpush2.msra.mxu0 %v1389
    %1622 = vmatprep.subr.mxu0 0.0
    %1623 = vmatpush2.msra.mxu0 %v1388
    %1624 = vmatprep.subr.mxu0 0.0
    %1625 = vmatpush2.msra.mxu0 %v1387
    %1626 = vmatprep.subr.mxu0 0.0
    %1627 = vmatpush2.msra.mxu0 %v1386
    %1628 = vmatprep.subr.mxu0 0.0
    %1629 = vmatpush2.msra.mxu0 %v1385
    %1630 = vmatprep.subr.mxu0 0.0
    %1631 = vmatpush2.msra.mxu0 %v1384
    %1632 = vmatprep.subr.mxu0 0.0
    %1633 = vmatpush2.msra.mxu0 %v1383
    %1634 = vmatprep.subr.mxu0 0.0
    %1635 = vmatpush2.msra.mxu0 %v1382
    %1636 = vmatprep.subr.mxu0 0.0
    %1637 = vmatpush2.msra.mxu0 %v1381
    %1638 = vmatprep.mubr.f32.mxu0 %v1278
    %1639 = vmatmul.mubr.f32.gmra.mxu0 %v1275
    %v1640 = vpop.f32.mrf.mxu0
    %v1641 = vadd.f32 %v1556, %v1640
    %v1642 = vpop.f32.mrf.mxu0
    %1643 = vmatprep.mubr.f32.mxu0 %v1282
    %1644 = vmatmul.mubr.f32.gmra.mxu0 %v1280
    %v1645 = vpop.f32.mrf.mxu0
    %v1646 = vadd.f32 %v1561, %v1645
    %v1647 = vpop.f32.mrf.mxu0
    %1648 = vmatprep.mubr.f32.mxu0 %v1288
    %1649 = vmatmul.mubr.f32.gmra.mxu0 %v1285
    %v1650 = vpop.f32.mrf.mxu0
    %v1651 = vadd.f32 %v1566, %v1650
    %v1652 = vpop.f32.mrf.mxu0
    %1653 = vmatprep.mubr.f32.mxu0 %v1292
    %1654 = vmatmul.mubr.f32.gmra.mxu0 %v1290
    %v1655 = vpop.f32.mrf.mxu0
    %v1656 = vadd.f32 %v1571, %v1655
    %v1657 = vpop.f32.mrf.mxu0
    %1658 = vdwg.mxu0
    %1659 = vmax.xlane.f32.xlu0 %v1641
    %v1660 = vpop.xlane.xlu0 %1659
    %1661 = vmax.xlane.f32.xlu0 %v1646
    %v1662 = vpop.xlane.xlu0 %1661
    %1663 = vmax.xlane.f32.xlu0 %v1651
    %v1664 = vpop.xlane.xlu0 %1663
    %1665 = vmax.xlane.f32.xlu0 %v1656
    %v1666 = vpop.xlane.xlu0 %1665
    %v1667 = vmax.f32 %v1660, %v1662
    %v1668 = vrot.slane %v1667, 4
    %v1669 = vmax.f32 %v1667, %v1668
    %v1670 = vrot.slane %v1669, 2
    %v1671 = vmax.f32 %v1669, %v1670
    %v1672 = vrot.slane %v1671, 1
    %v1673 = vmax.f32 %v1671, %v1672
    %v1674 = vmax.f32 %v1664, %v1666
    %v1675 = vrot.slane %v1674, 4
    %v1676 = vmax.f32 %v1674, %v1675
    %v1677 = vrot.slane %v1676, 2
    %v1678 = vmax.f32 %v1676, %v1677
    %v1679 = vrot.slane %v1678, 1
    %v1680 = vmax.f32 %v1678, %v1679
    %v1681 = vsub.f32 %v1641, %v1673
    %v1682 = vsub.f32 %v1646, %v1673
    %v1683 = vsub.f32 %v1651, %v1680
    %v1684 = vsub.f32 %v1656, %v1680
    %v1685 = vmul.f32 %v1681, 1.442695
    %v1686 = vpow.pop %v1685
    %v1687 = vmul.f32 %v1682, 1.442695
    %v1688 = vpow.pop %v1687
    %v1689 = vmul.f32 %v1683, 1.442695
    %v1690 = vpow.pop %v1689
    %v1691 = vmul.f32 %v1684, 1.442695
    %v1692 = vpow.pop %v1691
    %1693 = vadd.xlane.f32.xlu0 %v1686
    %v1694 = vpop.xlane.xlu0 %1693
    %1695 = vadd.xlane.f32.xlu0 %v1688
    %v1696 = vpop.xlane.xlu0 %1695
    %1697 = vadd.xlane.f32.xlu0 %v1690
    %v1698 = vpop.xlane.xlu0 %1697
    %1699 = vadd.xlane.f32.xlu0 %v1692
    %v1700 = vpop.xlane.xlu0 %1699
    %v1701 = vadd.f32 %v1694, %v1696
    %v1702 = vrot.slane %v1701, 4
    %v1703 = vadd.f32 %v1701, %v1702
    %v1704 = vrot.slane %v1703, 2
    %v1705 = vadd.f32 %v1703, %v1704
    %v1706 = vrot.slane %v1705, 1
    %v1707 = vadd.f32 %v1705, %v1706
    %v1708 = vadd.f32 %v1698, %v1700
    %v1709 = vrot.slane %v1708, 4
    %v1710 = vadd.f32 %v1708, %v1709
    %v1711 = vrot.slane %v1710, 2
    %v1712 = vadd.f32 %v1710, %v1711
    %v1713 = vrot.slane %v1712, 1
    %v1714 = vadd.f32 %v1712, %v1713
    %v1715 = vrcp.pop %v1707
    %v1716 = vrcp.pop %v1714
    %v1717 = vmul.f32 %v1686, %v1715
    %v1718 = vmul.f32 %v1690, %v1716
    %s1720 = vtos %v1717
    %v1721 = vstv %s1720
    %s1724 = vtos %v1718
    %v1725 = vstv %s1724
    %v1727 = vmul.f32 %v928, %v1721
    %v1728 = vmul.f32 %v930, %v1721
    %v1729 = vmul.f32 %v932, %v1725
    %v1730 = vmul.f32 %v934, %v1725
    %1731 = vrot.lane.b32.xlu0 %v1717, 120
    %v1732 = vpop.permute.xlu0 %1731
    %1733 = vrot.lane.b32.xlu0 %v1718, 120
    %v1734 = vpop.permute.xlu0 %1733
    %s1735 = vtos %v1732
    %v1736 = vstv %s1735
    %s1738 = vtos %v1734
    %v1739 = vstv %s1738
    %v1741 = vmul.f32 %v929, %v1736
    %v1742 = vmul.f32 %v931, %v1736
    %v1743 = vmul.f32 %v933, %v1739
    %v1744 = vmul.f32 %v935, %v1739
    %v1745 = vadd.f32 %v1727, %v1741
    %v1746 = vadd.f32 %v1728, %v1742
    %v1747 = vadd.f32 %v1729, %v1743
    %v1748 = vadd.f32 %v1730, %v1744
    %1749 = vst [vmem:[%s9] sm:$0xff] %v1745
    %1750 = vst [vmem:[%s9 + $0x8] sm:$0xff] %v1746
    %1751 = vst [vmem:[%s9 + $0x10] sm:$0xff] %v1747
    %1752 = vst [vmem:[%s9 + $0x18] sm:$0xff] %v1748
    // Predicated region
    $region50: #{fem_forward.1} parent=1 // pred_check
      _
    $region51: #{fem_forward.1} parent=1 // pred_check_branch
      %1754 = sbr.rel (0) target = $region53
    $region52: #{fem_forward.1} parent=1 // pred_region
      _
    $region53: #{fem_forward.1} parent=1 // pred_fallthru
      _
    // Predicated region
    $region54: #{fem_forward.1} parent=1 // pred_check
      _
    $region55: #{fem_forward.1} parent=1 // pred_check_branch
      %1756 = sbr.rel (0) target = $region57
    $region56: #{fem_forward.1} parent=1 // pred_region
      _
    $region57: #{fem_forward.1} parent=1 // pred_fallthru
      _
    %1757 = vsyncpa [#allocation3], 1
    %1758 = vsyncpa [#allocation5], 1

</llo_original>
